<compile_context>
chip_gen: v7x
topology: tpu7x:2x2x1
jax: 0.10.0
libtpu: 0.0.40
codegen_flags: <defaults>
</compile_context>

<pallas_src>
import functools

import jax
import jax.numpy as jnp
from jax import lax
from jax.experimental import pallas as pl
from jax.experimental.pallas import tpu as pltpu


def _round_up(x, m):
    return -(-x // m) * m


def bilstm_kernel(xcat_ref,   # (T*Bp, Dc)  f32 : [x_t | x_{T-1-t}] lane padded
                  wih_ref,    # (Dc, 8Hp)   f32 : input weights, gate-interleaved
                  whh_ref,    # (2Hp, 8Hp)  f32 : block-diag recurrent weights
                  bg_ref,     # (1, 8Hp)    f32 : b_ih + b_hh, both directions
                  wfcf_ref,   # (Hp, Vp)    f32 : fc weights (fwd half)
                  wfcb_ref,   # (Hp, Vp)    f32 : fc weights (bwd half)
                  bfc_ref,    # (1, Vp)     f32 : fc bias (-1e30 in padded lanes)
                  out_ref,    # (T*Bp, Vp)  f32 : log-probs, time-major rows
                  hsteps_ref, # scratch (T*Bp, 2Hp) f32 : [h_f | h_b] per step
                  *, T, Bp, Hp):
    G = 2 * Hp                       # lanes per gate block ([fwd | bwd])
    Vp = out_ref.shape[-1]

    # Hoisted broadcasts (JAX does not CSE broadcast_in_dim inside loops).
    bias_g = jnp.broadcast_to(bg_ref[...], (Bp, 8 * Hp))

    # ---------------- recurrence: both directions fused ----------------
    def one_step(s, h, c):
        row = pl.multiple_of(s * Bp, Bp)
        xrow = xcat_ref[pl.ds(row, Bp), :]                       # (Bp, Dc)
        gates = (jnp.dot(h, whh_ref[...],
                         preferred_element_type=jnp.float32)     # critical path
                 + jnp.dot(xrow, wih_ref[...],
                           preferred_element_type=jnp.float32)   # off critical path
                 + bias_g)                                       # (Bp, 8Hp)
        i = jax.nn.sigmoid(gates[:, 0 * G:1 * G])
        f = jax.nn.sigmoid(gates[:, 1 * G:2 * G])
        g = jnp.tanh(gates[:, 2 * G:3 * G])
        o = jax.nn.sigmoid(gates[:, 3 * G:4 * G])
        c_new = f * c + i * g
        h_new = o * jnp.tanh(c_new)
        # One full-width, lane-dense (Bp, 2Hp) store; fwd half = output time s,
        # bwd half = output time T-1-s (resolved when reading in the epilogue).
        hsteps_ref[pl.ds(row, Bp), :] = h_new
        return h_new, c_new

    h0 = jnp.zeros((Bp, G), jnp.float32)
    c0 = jnp.zeros((Bp, G), jnp.float32)

    U = 4 if T % 4 == 0 else (2 if T % 2 == 0 else 1)

    def rec_block(blk, carry):
        h, c = carry
        base = blk * U
        for j in range(U):                 # manual unroll for LLO visibility
            h, c = one_step(base + j, h, c)
        return (h, c)

    lax.fori_loop(0, T // U, rec_block, (h0, c0))

    # ---------------- fc + log_softmax, tiled over output time ----------------
    bias_fc = jnp.broadcast_to(bfc_ref[...], (Bp, Vp))

    def fc_one(t):
        rf = pl.multiple_of(t * Bp, Bp)
        rb = pl.multiple_of((T - 1 - t) * Bp, Bp)
        hf = hsteps_ref[pl.ds(rf, Bp), :][:, :Hp]     # fwd hidden for time t
        hb = hsteps_ref[pl.ds(rb, Bp), :][:, Hp:]     # bwd hidden for time t
        logits = (jnp.dot(hf, wfcf_ref[...], preferred_element_type=jnp.float32)
                  + jnp.dot(hb, wfcb_ref[...], preferred_element_type=jnp.float32)
                  + bias_fc)                          # (Bp, Vp); pad lanes ~ -1e30
        m = jnp.max(logits, axis=-1, keepdims=True)
        z = logits - m
        lse = jnp.log(jnp.sum(jnp.exp(z), axis=-1, keepdims=True))
        out_ref[pl.ds(rf, Bp), :] = (z - lse).astype(out_ref.dtype)

    Ue = 2 if T % 2 == 0 else 1

    def fc_block(blk, carry):
        base = blk * Ue
        for j in range(Ue):
            fc_one(base + j)
        return carry

    lax.fori_loop(0, T // Ue, fc_block, 0)


@jax.jit
def bilstm_forward(x, params):
    """x: (B, input_dim, T) float32, returns (T, B, num_vocabs) log-probs."""
    (wih_f, whh_f, b_f, wih_b, whh_b, b_b, wfc, bfc) = params
    B, D, T = x.shape
    H = whh_f.shape[0]
    V = wfc.shape[1]

    # Padded sizes: batch -> sublane multiple, H -> 64 (so 2Hp is 128-lane
    # aligned per gate), V -> 128 (lane-dense output), 2D -> 128 (x_cat lanes).
    Bp = max(8, _round_up(B, 8))
    Hp = _round_up(H, 64)
    Vp = _round_up(V, 128)
    Dc = _round_up(2 * D, 128)

    # x: (B, D, T) -> (T, Bp, 2D) with the backward direction's time reversal
    # fused in; lane-padded and flattened. This stays tiny (D << 8H), the whole
    # point of doing the input projection in-kernel.
    xp = jnp.pad(x, ((0, Bp - B), (0, 0), (0, 0))) if Bp != B else x
    x_tbd = jnp.transpose(xp, (2, 0, 1))                       # (T, Bp, D)
    x_cat = jnp.concatenate([x_tbd, x_tbd[::-1]], axis=-1)     # (T, Bp, 2D)
    x_cat = jnp.pad(x_cat, ((0, 0), (0, 0), (0, Dc - 2 * D)))
    x_cat = x_cat.reshape(T * Bp, Dc).astype(jnp.float32)

    def place(w4h, direction):
        """(R, 4H) gates in PyTorch [i|f|g|o] order -> (R, 8Hp) interleaved
        layout [i_f,i_b | f_f,f_b | g_f,g_b | o_f,o_b], zero-padded lanes."""
        R = w4h.shape[0]
        out = jnp.zeros((R, 4, 2, Hp), jnp.float32)
        out = out.at[:, :, direction, :H].set(w4h.reshape(R, 4, H))
        return out.reshape(R, 8 * Hp)

    # Input-projection weights (fwd rows then bwd rows to match x_cat lanes).
    wih_cat = jnp.zeros((Dc, 8 * Hp), jnp.float32)
    wih_cat = wih_cat.at[:D].set(place(wih_f, 0))
    wih_cat = wih_cat.at[D:2 * D].set(place(wih_b, 1))

    # Block-diagonal recurrent weights: [h_f | h_b] (Bp, 2Hp) -> gates (Bp, 8Hp).
    whh_bd = jnp.zeros((2 * Hp, 8 * Hp), jnp.float32)
    whh_bd = whh_bd.at[:H].set(place(whh_f, 0))
    whh_bd = whh_bd.at[Hp:Hp + H].set(place(whh_b, 1))

    bg = place(b_f, 0) + place(b_b, 1)                         # (1, 8Hp)

    # fc weights split per direction, lane/row padded (pad bias lanes = -1e30 so
    # log_softmax ignores them).
    wfcf = jnp.zeros((Hp, Vp), jnp.float32).at[:H, :V].set(wfc[:H])
    wfcb = jnp.zeros((Hp, Vp), jnp.float32).at[:H, :V].set(wfc[H:])
    bfc_p = jnp.full((1, Vp), -1e30, jnp.float32).at[:, :V].set(
        bfc.reshape(1, V).astype(jnp.float32))

    # VMEM budget derived from actual residency (not hard-capped at 64 MiB).
    bytes_in = 4 * (x_cat.size + wih_cat.size + whh_bd.size + bg.size
                    + wfcf.size + wfcb.size + bfc_p.size)
    bytes_out = 4 * T * Bp * Vp
    bytes_scratch = 4 * T * Bp * 2 * Hp
    need = bytes_in + bytes_out + bytes_scratch
    vmem_limit = int(min(max(2 * need + (8 << 20), 32 << 20), 100 << 20))

    flops = (2 * T * Bp * (2 * Hp * 8 * Hp + Dc * 8 * Hp)      # recurrence
             + 2 * T * Bp * 2 * Hp * Vp)                       # fc
    transcendentals = T * Bp * (10 * Hp) + T * Bp * (Vp + 1)   # gates + softmax
    cost = pl.CostEstimate(flops=int(flops),
                           transcendentals=int(transcendentals),
                           bytes_accessed=int(bytes_in + bytes_out))

    kernel = functools.partial(bilstm_kernel, T=T, Bp=Bp, Hp=Hp)
    vmem = pl.BlockSpec(memory_space=pltpu.MemorySpace.VMEM)
    out = pl.pallas_call(
        kernel,
        out_shape=jax.ShapeDtypeStruct((T * Bp, Vp), jnp.float32),
        in_specs=[vmem] * 7,
        out_specs=vmem,
        scratch_shapes=[pltpu.VMEM((T * Bp, 2 * Hp), jnp.float32)],
        compiler_params=pltpu.CompilerParams(vmem_limit_bytes=vmem_limit),
        cost_estimate=cost,
    )(x_cat, wih_cat, whh_bd, bg, wfcf, wfcb, bfc_p)

    return out.reshape(T, Bp, Vp)[:, :B, :V]


def init_params(key, input_dim, hidden_size, num_vocabs):
    """Deterministic init mimicking PyTorch's uniform(-1/sqrt(H), 1/sqrt(H))."""
    H, D, V = hidden_size, input_dim, num_vocabs
    k = 1.0 / jnp.sqrt(jnp.float32(H))
    ks = jax.random.split(key, 10)
    u = lambda kk, shape: jax.random.uniform(kk, shape, jnp.float32, -k, k)

    # PyTorch stores W_ih: (4H, D), W_hh: (4H, H); pre-transpose to (in, out).
    wih_f = u(ks[0], (4 * H, D)).T          # (D, 4H)
    whh_f = u(ks[1], (4 * H, H)).T          # (H, 4H)
    b_f = (u(ks[2], (4 * H,)) + u(ks[3], (4 * H,))).reshape(1, 4 * H)  # b_ih + b_hh
    wih_b = u(ks[4], (4 * H, D)).T
    whh_b = u(ks[5], (4 * H, H)).T
    b_b = (u(ks[6], (4 * H,)) + u(ks[7], (4 * H,))).reshape(1, 4 * H)
    # Linear(2H -> V): PyTorch weight (V, 2H); pre-transpose to (2H, V).
    kf = 1.0 / jnp.sqrt(jnp.float32(2 * H))
    wfc = jax.random.uniform(ks[8], (V, 2 * H), jnp.float32, -kf, kf).T
    bfc = jax.random.uniform(ks[9], (1, V), jnp.float32, -kf, kf)
    return (wih_f, whh_f, b_f, wih_b, whh_b, b_b, wfc, bfc)


def reference_forward(x, params):
    """Pure-JAX f32 reference mirroring nn.LSTM(bidirectional) + fc + log_softmax."""
    (wih_f, whh_f, b_f, wih_b, whh_b, b_b, wfc, bfc) = params
    B, D, T = x.shape
    H = whh_f.shape[0]
    x_btd = jnp.transpose(x, (0, 2, 1)).astype(jnp.float32)  # (B, T, D)

    def run_dir(xs, wih, whh, b):
        def step(carry, xt):
            h, c = carry
            gates = xt @ wih + h @ whh + b[0]
            i = jax.nn.sigmoid(gates[:, :H])
            f = jax.nn.sigmoid(gates[:, H:2 * H])
            g = jnp.tanh(gates[:, 2 * H:3 * H])
            o = jax.nn.sigmoid(gates[:, 3 * H:])
            c_new = f * c + i * g
            h_new = o * jnp.tanh(c_new)
            return (h_new, c_new), h_new

        h0 = jnp.zeros((B, H), jnp.float32)
        _, hs = lax.scan(step, (h0, h0), jnp.transpose(xs, (1, 0, 2)))  # (T, B, H)
        return hs

    hf = run_dir(x_btd, wih_f, whh_f, b_f)                       # (T, B, H)
    hb = run_dir(x_btd[:, ::-1, :], wih_b, whh_b, b_b)[::-1]     # (T, B, H)
    h_all = jnp.concatenate([hf, hb], axis=-1)                   # (T, B, 2H)
    logits = jnp.einsum('tbh,hv->tbv', h_all, wfc) + bfc
    return jax.nn.log_softmax(logits, axis=-1)                   # (T, B, V)


if __name__ == "__main__":
    B, INPUT_DIM, T = 2, 4, 16
    HIDDEN, VOCAB = 32, 16

    key = jax.random.PRNGKey(0)
    k_x, k_p = jax.random.split(key)
    x = jax.random.normal(k_x, (B, INPUT_DIM, T), jnp.float32)   # input_mel: (B, D, T)
    params = init_params(k_p, INPUT_DIM, HIDDEN, VOCAB)

    out = jax.block_until_ready(bilstm_forward(x, params))
    assert out.shape == (T, B, VOCAB), out.shape

    ref = jax.block_until_ready(reference_forward(x, params))
    max_err = float(jnp.max(jnp.abs(out - ref)))
    # f32 operands everywhere; tolerance covers TPU default-precision MXU passes
    # accumulated over the recurrence.
    assert max_err < 3e-2, f"mismatch vs reference: {max_err}"

    print("KERNEL_OK")
</pallas_src>

<mosaic_0001>
module attributes {stable_mosaic.version = 11 : i64} {
  func.func @bilstm_kernel(%arg0: memref<128x128xf32, #tpu.memory_space<vmem>>, %arg1: memref<128x512xf32, #tpu.memory_space<vmem>>, %arg2: memref<128x512xf32, #tpu.memory_space<vmem>>, %arg3: memref<1x512xf32, #tpu.memory_space<vmem>>, %arg4: memref<64x128xf32, #tpu.memory_space<vmem>>, %arg5: memref<64x128xf32, #tpu.memory_space<vmem>>, %arg6: memref<1x128xf32, #tpu.memory_space<vmem>>, %arg7: memref<128x128xf32, #tpu.memory_space<vmem>>, %arg8: memref<128x128xf32, #tpu.memory_space<vmem>>) attributes {dimension_semantics = [], scalar_prefetch = 0 : i64, scratch_operands = 1 : i64, tpu.core_type = #tpu.core_type<tc>} {
    %c0 = arith.constant 0 : index
    %c0_0 = arith.constant 0 : index
    %0 = vector.load %arg3[%c0, %c0_0] : memref<1x512xf32, #tpu.memory_space<vmem>>, vector<1x512xf32>
    %1 = vector.shape_cast %0 : vector<1x512xf32> to vector<1x512xf32>
    %2 = vector.broadcast %1 : vector<1x512xf32> to vector<8x512xf32>
    %cst = arith.constant 0.000000e+00 : f32
    %3 = vector.broadcast %cst : f32 to vector<8x128xf32>
    %cst_1 = arith.constant 0.000000e+00 : f32
    %4 = vector.broadcast %cst_1 : f32 to vector<8x128xf32>
    %c0_i32 = arith.constant 0 : i32
    %c4_i32 = arith.constant 4 : i32
    %5 = arith.addi %c0_i32, %c4_i32 : i32
    %c1_i32 = arith.constant 1 : i32
    %6:2 = scf.for %arg9 = %c0_i32 to %5 step %c1_i32 iter_args(%arg10 = %3, %arg11 = %4) -> (vector<8x128xf32>, vector<8x128xf32>)  : i32 {
      %c4_i32_8 = arith.constant 4 : i32
      %11 = arith.muli %arg9, %c4_i32_8 : i32
      %c0_i32_9 = arith.constant 0 : i32
      %12 = arith.addi %11, %c0_i32_9 : i32
      %c8_i32_10 = arith.constant 8 : i32
      %13 = arith.muli %12, %c8_i32_10 : i32
      %14 = tpu.assume_multiple %13, 8 : i32
      %15 = arith.index_cast %14 : i32 to index
      %c0_11 = arith.constant 0 : index
      %16 = vector.load %arg0[%15, %c0_11] : memref<128x128xf32, #tpu.memory_space<vmem>>, vector<8x128xf32>
      %c0_12 = arith.constant 0 : index
      %c0_13 = arith.constant 0 : index
      %17 = vector.load %arg2[%c0_12, %c0_13] : memref<128x512xf32, #tpu.memory_space<vmem>>, vector<128x512xf32>
      %cst_14 = arith.constant dense<0.000000e+00> : vector<8x512xf32>
      %18 = tpu.matmul %arg10, %17, %cst_14 {dimension_numbers = #tpu.dot_dimension_numbers<[1], [0], [0], [1], [0, 0, 1, 1], [], []>} : vector<8x128xf32>, vector<128x512xf32>, vector<8x512xf32> -> vector<8x512xf32>
      %c0_15 = arith.constant 0 : index
      %c0_16 = arith.constant 0 : index
      %19 = vector.load %arg1[%c0_15, %c0_16] : memref<128x512xf32, #tpu.memory_space<vmem>>, vector<128x512xf32>
      %cst_17 = arith.constant dense<0.000000e+00> : vector<8x512xf32>
      %20 = tpu.matmul %16, %19, %cst_17 {dimension_numbers = #tpu.dot_dimension_numbers<[1], [0], [0], [1], [0, 0, 1, 1], [], []>} : vector<8x128xf32>, vector<128x512xf32>, vector<8x512xf32> -> vector<8x512xf32>
      %21 = arith.addf %18, %20 : vector<8x512xf32>
      %22 = arith.addf %21, %2 : vector<8x512xf32>
      %23 = vector.extract_strided_slice %22 {offsets = [0, 0], sizes = [8, 128], strides = [1, 1]} : vector<8x512xf32> to vector<8x128xf32>
      %24 = arith.negf %23 : vector<8x128xf32>
      %25 = math.exp %24 : vector<8x128xf32>
      %cst_18 = arith.constant 1.000000e+00 : f32
      %26 = vector.broadcast %cst_18 : f32 to vector<8x128xf32>
      %27 = arith.addf %26, %25 : vector<8x128xf32>
      %28 = arith.divf %26, %27 : vector<8x128xf32>
      %29 = vector.extract_strided_slice %22 {offsets = [0, 128], sizes = [8, 128], strides = [1, 1]} : vector<8x512xf32> to vector<8x128xf32>
      %30 = arith.negf %29 : vector<8x128xf32>
      %31 = math.exp %30 : vector<8x128xf32>
      %cst_19 = arith.constant 1.000000e+00 : f32
      %32 = vector.broadcast %cst_19 : f32 to vector<8x128xf32>
      %33 = arith.addf %32, %31 : vector<8x128xf32>
      %34 = arith.divf %32, %33 : vector<8x128xf32>
      %35 = vector.extract_strided_slice %22 {offsets = [0, 256], sizes = [8, 128], strides = [1, 1]} : vector<8x512xf32> to vector<8x128xf32>
      %36 = math.tanh %35 : vector<8x128xf32>
      %37 = vector.extract_strided_slice %22 {offsets = [0, 384], sizes = [8, 128], strides = [1, 1]} : vector<8x512xf32> to vector<8x128xf32>
      %38 = arith.negf %37 : vector<8x128xf32>
      %39 = math.exp %38 : vector<8x128xf32>
      %cst_20 = arith.constant 1.000000e+00 : f32
      %40 = vector.broadcast %cst_20 : f32 to vector<8x128xf32>
      %41 = arith.addf %40, %39 : vector<8x128xf32>
      %42 = arith.divf %40, %41 : vector<8x128xf32>
      %43 = arith.mulf %34, %arg11 : vector<8x128xf32>
      %44 = arith.mulf %28, %36 : vector<8x128xf32>
      %45 = arith.addf %43, %44 : vector<8x128xf32>
      %46 = math.tanh %45 : vector<8x128xf32>
      %47 = arith.mulf %42, %46 : vector<8x128xf32>
      %48 = arith.index_cast %14 : i32 to index
      %c0_21 = arith.constant 0 : index
      %49 = vector.load %arg8[%48, %c0_21] : memref<128x128xf32, #tpu.memory_space<vmem>>, vector<8x128xf32>
      tpu.vector_store %arg8[%48, %c0_21], %47 {strides = array<i32>} : memref<128x128xf32, #tpu.memory_space<vmem>>, vector<8x128xf32>,
      %c1_i32_22 = arith.constant 1 : i32
      %50 = arith.addi %11, %c1_i32_22 : i32
      %c8_i32_23 = arith.constant 8 : i32
      %51 = arith.muli %50, %c8_i32_23 : i32
      %52 = tpu.assume_multiple %51, 8 : i32
      %53 = arith.index_cast %52 : i32 to index
      %c0_24 = arith.constant 0 : index
      %54 = vector.load %arg0[%53, %c0_24] : memref<128x128xf32, #tpu.memory_space<vmem>>, vector<8x128xf32>
      %c0_25 = arith.constant 0 : index
      %c0_26 = arith.constant 0 : index
      %55 = vector.load %arg2[%c0_25, %c0_26] : memref<128x512xf32, #tpu.memory_space<vmem>>, vector<128x512xf32>
      %cst_27 = arith.constant dense<0.000000e+00> : vector<8x512xf32>
      %56 = tpu.matmul %47, %55, %cst_27 {dimension_numbers = #tpu.dot_dimension_numbers<[1], [0], [0], [1], [0, 0, 1, 1], [], []>} : vector<8x128xf32>, vector<128x512xf32>, vector<8x512xf32> -> vector<8x512xf32>
      %c0_28 = arith.constant 0 : index
      %c0_29 = arith.constant 0 : index
      %57 = vector.load %arg1[%c0_28, %c0_29] : memref<128x512xf32, #tpu.memory_space<vmem>>, vector<128x512xf32>
      %cst_30 = arith.constant dense<0.000000e+00> : vector<8x512xf32>
      %58 = tpu.matmul %54, %57, %cst_30 {dimension_numbers = #tpu.dot_dimension_numbers<[1], [0], [0], [1], [0, 0, 1, 1], [], []>} : vector<8x128xf32>, vector<128x512xf32>, vector<8x512xf32> -> vector<8x512xf32>
      %59 = arith.addf %56, %58 : vector<8x512xf32>
      %60 = arith.addf %59, %2 : vector<8x512xf32>
      %61 = vector.extract_strided_slice %60 {offsets = [0, 0], sizes = [8, 128], strides = [1, 1]} : vector<8x512xf32> to vector<8x128xf32>
      %62 = arith.negf %61 : vector<8x128xf32>
      %63 = math.exp %62 : vector<8x128xf32>
      %cst_31 = arith.constant 1.000000e+00 : f32
      %64 = vector.broadcast %cst_31 : f32 to vector<8x128xf32>
      %65 = arith.addf %64, %63 : vector<8x128xf32>
      %66 = arith.divf %64, %65 : vector<8x128xf32>
      %67 = vector.extract_strided_slice %60 {offsets = [0, 128], sizes = [8, 128], strides = [1, 1]} : vector<8x512xf32> to vector<8x128xf32>
      %68 = arith.negf %67 : vector<8x128xf32>
      %69 = math.exp %68 : vector<8x128xf32>
      %cst_32 = arith.constant 1.000000e+00 : f32
      %70 = vector.broadcast %cst_32 : f32 to vector<8x128xf32>
      %71 = arith.addf %70, %69 : vector<8x128xf32>
      %72 = arith.divf %70, %71 : vector<8x128xf32>
      %73 = vector.extract_strided_slice %60 {offsets = [0, 256], sizes = [8, 128], strides = [1, 1]} : vector<8x512xf32> to vector<8x128xf32>
      %74 = math.tanh %73 : vector<8x128xf32>
      %75 = vector.extract_strided_slice %60 {offsets = [0, 384], sizes = [8, 128], strides = [1, 1]} : vector<8x512xf32> to vector<8x128xf32>
      %76 = arith.negf %75 : vector<8x128xf32>
      %77 = math.exp %76 : vector<8x128xf32>
      %cst_33 = arith.constant 1.000000e+00 : f32
      %78 = vector.broadcast %cst_33 : f32 to vector<8x128xf32>
      %79 = arith.addf %78, %77 : vector<8x128xf32>
      %80 = arith.divf %78, %79 : vector<8x128xf32>
      %81 = arith.mulf %72, %45 : vector<8x128xf32>
      %82 = arith.mulf %66, %74 : vector<8x128xf32>
      %83 = arith.addf %81, %82 : vector<8x128xf32>
      %84 = math.tanh %83 : vector<8x128xf32>
      %85 = arith.mulf %80, %84 : vector<8x128xf32>
      %86 = arith.index_cast %52 : i32 to index
      %c0_34 = arith.constant 0 : index
      %87 = vector.load %arg8[%86, %c0_34] : memref<128x128xf32, #tpu.memory_space<vmem>>, vector<8x128xf32>
      tpu.vector_store %arg8[%86, %c0_34], %85 {strides = array<i32>} : memref<128x128xf32, #tpu.memory_space<vmem>>, vector<8x128xf32>,
      %c2_i32 = arith.constant 2 : i32
      %88 = arith.addi %11, %c2_i32 : i32
      %c8_i32_35 = arith.constant 8 : i32
      %89 = arith.muli %88, %c8_i32_35 : i32
      %90 = tpu.assume_multiple %89, 8 : i32
      %91 = arith.index_cast %90 : i32 to index
      %c0_36 = arith.constant 0 : index
      %92 = vector.load %arg0[%91, %c0_36] : memref<128x128xf32, #tpu.memory_space<vmem>>, vector<8x128xf32>
      %c0_37 = arith.constant 0 : index
      %c0_38 = arith.constant 0 : index
      %93 = vector.load %arg2[%c0_37, %c0_38] : memref<128x512xf32, #tpu.memory_space<vmem>>, vector<128x512xf32>
      %cst_39 = arith.constant dense<0.000000e+00> : vector<8x512xf32>
      %94 = tpu.matmul %85, %93, %cst_39 {dimension_numbers = #tpu.dot_dimension_numbers<[1], [0], [0], [1], [0, 0, 1, 1], [], []>} : vector<8x128xf32>, vector<128x512xf32>, vector<8x512xf32> -> vector<8x512xf32>
      %c0_40 = arith.constant 0 : index
      %c0_41 = arith.constant 0 : index
      %95 = vector.load %arg1[%c0_40, %c0_41] : memref<128x512xf32, #tpu.memory_space<vmem>>, vector<128x512xf32>
      %cst_42 = arith.constant dense<0.000000e+00> : vector<8x512xf32>
      %96 = tpu.matmul %92, %95, %cst_42 {dimension_numbers = #tpu.dot_dimension_numbers<[1], [0], [0], [1], [0, 0, 1, 1], [], []>} : vector<8x128xf32>, vector<128x512xf32>, vector<8x512xf32> -> vector<8x512xf32>
      %97 = arith.addf %94, %96 : vector<8x512xf32>
      %98 = arith.addf %97, %2 : vector<8x512xf32>
      %99 = vector.extract_strided_slice %98 {offsets = [0, 0], sizes = [8, 128], strides = [1, 1]} : vector<8x512xf32> to vector<8x128xf32>
      %100 = arith.negf %99 : vector<8x128xf32>
      %101 = math.exp %100 : vector<8x128xf32>
      %cst_43 = arith.constant 1.000000e+00 : f32
      %102 = vector.broadcast %cst_43 : f32 to vector<8x128xf32>
      %103 = arith.addf %102, %101 : vector<8x128xf32>
      %104 = arith.divf %102, %103 : vector<8x128xf32>
      %105 = vector.extract_strided_slice %98 {offsets = [0, 128], sizes = [8, 128], strides = [1, 1]} : vector<8x512xf32> to vector<8x128xf32>
      %106 = arith.negf %105 : vector<8x128xf32>
      %107 = math.exp %106 : vector<8x128xf32>
      %cst_44 = arith.constant 1.000000e+00 : f32
      %108 = vector.broadcast %cst_44 : f32 to vector<8x128xf32>
      %109 = arith.addf %108, %107 : vector<8x128xf32>
      %110 = arith.divf %108, %109 : vector<8x128xf32>
      %111 = vector.extract_strided_slice %98 {offsets = [0, 256], sizes = [8, 128], strides = [1, 1]} : vector<8x512xf32> to vector<8x128xf32>
      %112 = math.tanh %111 : vector<8x128xf32>
      %113 = vector.extract_strided_slice %98 {offsets = [0, 384], sizes = [8, 128], strides = [1, 1]} : vector<8x512xf32> to vector<8x128xf32>
      %114 = arith.negf %113 : vector<8x128xf32>
      %115 = math.exp %114 : vector<8x128xf32>
      %cst_45 = arith.constant 1.000000e+00 : f32
      %116 = vector.broadcast %cst_45 : f32 to vector<8x128xf32>
      %117 = arith.addf %116, %115 : vector<8x128xf32>
      %118 = arith.divf %116, %117 : vector<8x128xf32>
      %119 = arith.mulf %110, %83 : vector<8x128xf32>
      %120 = arith.mulf %104, %112 : vector<8x128xf32>
      %121 = arith.addf %119, %120 : vector<8x128xf32>
      %122 = math.tanh %121 : vector<8x128xf32>
      %123 = arith.mulf %118, %122 : vector<8x128xf32>
      %124 = arith.index_cast %90 : i32 to index
      %c0_46 = arith.constant 0 : index
      %125 = vector.load %arg8[%124, %c0_46] : memref<128x128xf32, #tpu.memory_space<vmem>>, vector<8x128xf32>
      tpu.vector_store %arg8[%124, %c0_46], %123 {strides = array<i32>} : memref<128x128xf32, #tpu.memory_space<vmem>>, vector<8x128xf32>,
      %c3_i32 = arith.constant 3 : i32
      %126 = arith.addi %11, %c3_i32 : i32
      %c8_i32_47 = arith.constant 8 : i32
      %127 = arith.muli %126, %c8_i32_47 : i32
      %128 = tpu.assume_multiple %127, 8 : i32
      %129 = arith.index_cast %128 : i32 to index
      %c0_48 = arith.constant 0 : index
      %130 = vector.load %arg0[%129, %c0_48] : memref<128x128xf32, #tpu.memory_space<vmem>>, vector<8x128xf32>
      %c0_49 = arith.constant 0 : index
      %c0_50 = arith.constant 0 : index
      %131 = vector.load %arg2[%c0_49, %c0_50] : memref<128x512xf32, #tpu.memory_space<vmem>>, vector<128x512xf32>
      %cst_51 = arith.constant dense<0.000000e+00> : vector<8x512xf32>
      %132 = tpu.matmul %123, %131, %cst_51 {dimension_numbers = #tpu.dot_dimension_numbers<[1], [0], [0], [1], [0, 0, 1, 1], [], []>} : vector<8x128xf32>, vector<128x512xf32>, vector<8x512xf32> -> vector<8x512xf32>
      %c0_52 = arith.constant 0 : index
      %c0_53 = arith.constant 0 : index
      %133 = vector.load %arg1[%c0_52, %c0_53] : memref<128x512xf32, #tpu.memory_space<vmem>>, vector<128x512xf32>
      %cst_54 = arith.constant dense<0.000000e+00> : vector<8x512xf32>
      %134 = tpu.matmul %130, %133, %cst_54 {dimension_numbers = #tpu.dot_dimension_numbers<[1], [0], [0], [1], [0, 0, 1, 1], [], []>} : vector<8x128xf32>, vector<128x512xf32>, vector<8x512xf32> -> vector<8x512xf32>
      %135 = arith.addf %132, %134 : vector<8x512xf32>
      %136 = arith.addf %135, %2 : vector<8x512xf32>
      %137 = vector.extract_strided_slice %136 {offsets = [0, 0], sizes = [8, 128], strides = [1, 1]} : vector<8x512xf32> to vector<8x128xf32>
      %138 = arith.negf %137 : vector<8x128xf32>
      %139 = math.exp %138 : vector<8x128xf32>
      %cst_55 = arith.constant 1.000000e+00 : f32
      %140 = vector.broadcast %cst_55 : f32 to vector<8x128xf32>
      %141 = arith.addf %140, %139 : vector<8x128xf32>
      %142 = arith.divf %140, %141 : vector<8x128xf32>
      %143 = vector.extract_strided_slice %136 {offsets = [0, 128], sizes = [8, 128], strides = [1, 1]} : vector<8x512xf32> to vector<8x128xf32>
      %144 = arith.negf %143 : vector<8x128xf32>
      %145 = math.exp %144 : vector<8x128xf32>
      %cst_56 = arith.constant 1.000000e+00 : f32
      %146 = vector.broadcast %cst_56 : f32 to vector<8x128xf32>
      %147 = arith.addf %146, %145 : vector<8x128xf32>
      %148 = arith.divf %146, %147 : vector<8x128xf32>
      %149 = vector.extract_strided_slice %136 {offsets = [0, 256], sizes = [8, 128], strides = [1, 1]} : vector<8x512xf32> to vector<8x128xf32>
      %150 = math.tanh %149 : vector<8x128xf32>
      %151 = vector.extract_strided_slice %136 {offsets = [0, 384], sizes = [8, 128], strides = [1, 1]} : vector<8x512xf32> to vector<8x128xf32>
      %152 = arith.negf %151 : vector<8x128xf32>
      %153 = math.exp %152 : vector<8x128xf32>
      %cst_57 = arith.constant 1.000000e+00 : f32
      %154 = vector.broadcast %cst_57 : f32 to vector<8x128xf32>
      %155 = arith.addf %154, %153 : vector<8x128xf32>
      %156 = arith.divf %154, %155 : vector<8x128xf32>
      %157 = arith.mulf %148, %121 : vector<8x128xf32>
      %158 = arith.mulf %142, %150 : vector<8x128xf32>
      %159 = arith.addf %157, %158 : vector<8x128xf32>
      %160 = math.tanh %159 : vector<8x128xf32>
      %161 = arith.mulf %156, %160 : vector<8x128xf32>
      %162 = arith.index_cast %128 : i32 to index
      %c0_58 = arith.constant 0 : index
      %163 = vector.load %arg8[%162, %c0_58] : memref<128x128xf32, #tpu.memory_space<vmem>>, vector<8x128xf32>
      tpu.vector_store %arg8[%162, %c0_58], %161 {strides = array<i32>} : memref<128x128xf32, #tpu.memory_space<vmem>>, vector<8x128xf32>,
      scf.yield %161, %159 : vector<8x128xf32>, vector<8x128xf32>
    }
    %c4_i32_2 = arith.constant 4 : i32
    %c0_3 = arith.constant 0 : index
    %c0_4 = arith.constant 0 : index
    %7 = vector.load %arg6[%c0_3, %c0_4] : memref<1x128xf32, #tpu.memory_space<vmem>>, vector<1x128xf32>
    %8 = vector.shape_cast %7 : vector<1x128xf32> to vector<1x128xf32>
    %9 = vector.broadcast %8 : vector<1x128xf32> to vector<8x128xf32>
    %c0_i32_5 = arith.constant 0 : i32
    %c8_i32 = arith.constant 8 : i32
    %10 = arith.addi %c0_i32_5, %c8_i32 : i32
    %c1_i32_6 = arith.constant 1 : i32
    scf.for %arg9 = %c0_i32_5 to %10 step %c1_i32_6  : i32 {
      %c2_i32 = arith.constant 2 : i32
      %11 = arith.muli %arg9, %c2_i32 : i32
      %c0_i32_8 = arith.constant 0 : i32
      %12 = arith.addi %11, %c0_i32_8 : i32
      %c8_i32_9 = arith.constant 8 : i32
      %13 = arith.muli %12, %c8_i32_9 : i32
      %14 = tpu.assume_multiple %13, 8 : i32
      %c15_i32 = arith.constant 15 : i32
      %15 = arith.subi %c15_i32, %12 : i32
      %c8_i32_10 = arith.constant 8 : i32
      %16 = arith.muli %15, %c8_i32_10 : i32
      %17 = tpu.assume_multiple %16, 8 : i32
      %18 = arith.index_cast %14 : i32 to index
      %c0_11 = arith.constant 0 : index
      %19 = vector.load %arg8[%18, %c0_11] : memref<128x128xf32, #tpu.memory_space<vmem>>, vector<8x128xf32>
      %20 = vector.extract_strided_slice %19 {offsets = [0, 0], sizes = [8, 64], strides = [1, 1]} : vector<8x128xf32> to vector<8x64xf32>
      %21 = arith.index_cast %17 : i32 to index
      %c0_12 = arith.constant 0 : index
      %22 = vector.load %arg8[%21, %c0_12] : memref<128x128xf32, #tpu.memory_space<vmem>>, vector<8x128xf32>
      %23 = vector.extract_strided_slice %22 {offsets = [0, 64], sizes = [8, 64], strides = [1, 1]} : vector<8x128xf32> to vector<8x64xf32>
      %c0_13 = arith.constant 0 : index
      %c0_14 = arith.constant 0 : index
      %24 = vector.load %arg4[%c0_13, %c0_14] : memref<64x128xf32, #tpu.memory_space<vmem>>, vector<64x128xf32>
      %cst_15 = arith.constant dense<0.000000e+00> : vector<8x128xf32>
      %25 = tpu.matmul %20, %24, %cst_15 {dimension_numbers = #tpu.dot_dimension_numbers<[1], [0], [0], [1], [0, 0, 1, 1], [], []>} : vector<8x64xf32>, vector<64x128xf32>, vector<8x128xf32> -> vector<8x128xf32>
      %c0_16 = arith.constant 0 : index
      %c0_17 = arith.constant 0 : index
      %26 = vector.load %arg5[%c0_16, %c0_17] : memref<64x128xf32, #tpu.memory_space<vmem>>, vector<64x128xf32>
      %cst_18 = arith.constant dense<0.000000e+00> : vector<8x128xf32>
      %27 = tpu.matmul %23, %26, %cst_18 {dimension_numbers = #tpu.dot_dimension_numbers<[1], [0], [0], [1], [0, 0, 1, 1], [], []>} : vector<8x64xf32>, vector<64x128xf32>, vector<8x128xf32> -> vector<8x128xf32>
      %28 = arith.addf %25, %27 : vector<8x128xf32>
      %29 = arith.addf %28, %9 : vector<8x128xf32>
      %cst_19 = arith.constant dense<0xFF800000> : vector<8xf32>
      %30 = vector.multi_reduction <maximumf>, %29, %cst_19 [1] : vector<8x128xf32> to vector<8xf32>
      %31 = vector.shape_cast %30 : vector<8xf32> to vector<8x1xf32>
      %32 = vector.broadcast %31 : vector<8x1xf32> to vector<8x128xf32>
      %33 = arith.subf %29, %32 : vector<8x128xf32>
      %34 = math.exp %33 : vector<8x128xf32>
      %cst_20 = arith.constant dense<0.000000e+00> : vector<8xf32>
      %35 = vector.multi_reduction <add>, %34, %cst_20 [1] : vector<8x128xf32> to vector<8xf32>
      %36 = vector.shape_cast %35 : vector<8xf32> to vector<8x1xf32>
      %37 = math.log %36 : vector<8x1xf32>
      %38 = vector.broadcast %37 : vector<8x1xf32> to vector<8x128xf32>
      %39 = arith.subf %33, %38 : vector<8x128xf32>
      %40 = arith.index_cast %14 : i32 to index
      %c0_21 = arith.constant 0 : index
      %41 = vector.load %arg7[%40, %c0_21] : memref<128x128xf32, #tpu.memory_space<vmem>>, vector<8x128xf32>
      tpu.vector_store %arg7[%40, %c0_21], %39 {strides = array<i32>} : memref<128x128xf32, #tpu.memory_space<vmem>>, vector<8x128xf32>,
      %c1_i32_22 = arith.constant 1 : i32
      %42 = arith.addi %11, %c1_i32_22 : i32
      %c8_i32_23 = arith.constant 8 : i32
      %43 = arith.muli %42, %c8_i32_23 : i32
      %44 = tpu.assume_multiple %43, 8 : i32
      %c15_i32_24 = arith.constant 15 : i32
      %45 = arith.subi %c15_i32_24, %42 : i32
      %c8_i32_25 = arith.constant 8 : i32
      %46 = arith.muli %45, %c8_i32_25 : i32
      %47 = tpu.assume_multiple %46, 8 : i32
      %48 = arith.index_cast %44 : i32 to index
      %c0_26 = arith.constant 0 : index
      %49 = vector.load %arg8[%48, %c0_26] : memref<128x128xf32, #tpu.memory_space<vmem>>, vector<8x128xf32>
      %50 = vector.extract_strided_slice %49 {offsets = [0, 0], sizes = [8, 64], strides = [1, 1]} : vector<8x128xf32> to vector<8x64xf32>
      %51 = arith.index_cast %47 : i32 to index
      %c0_27 = arith.constant 0 : index
      %52 = vector.load %arg8[%51, %c0_27] : memref<128x128xf32, #tpu.memory_space<vmem>>, vector<8x128xf32>
      %53 = vector.extract_strided_slice %52 {offsets = [0, 64], sizes = [8, 64], strides = [1, 1]} : vector<8x128xf32> to vector<8x64xf32>
      %c0_28 = arith.constant 0 : index
      %c0_29 = arith.constant 0 : index
      %54 = vector.load %arg4[%c0_28, %c0_29] : memref<64x128xf32, #tpu.memory_space<vmem>>, vector<64x128xf32>
      %cst_30 = arith.constant dense<0.000000e+00> : vector<8x128xf32>
      %55 = tpu.matmul %50, %54, %cst_30 {dimension_numbers = #tpu.dot_dimension_numbers<[1], [0], [0], [1], [0, 0, 1, 1], [], []>} : vector<8x64xf32>, vector<64x128xf32>, vector<8x128xf32> -> vector<8x128xf32>
      %c0_31 = arith.constant 0 : index
      %c0_32 = arith.constant 0 : index
      %56 = vector.load %arg5[%c0_31, %c0_32] : memref<64x128xf32, #tpu.memory_space<vmem>>, vector<64x128xf32>
      %cst_33 = arith.constant dense<0.000000e+00> : vector<8x128xf32>
      %57 = tpu.matmul %53, %56, %cst_33 {dimension_numbers = #tpu.dot_dimension_numbers<[1], [0], [0], [1], [0, 0, 1, 1], [], []>} : vector<8x64xf32>, vector<64x128xf32>, vector<8x128xf32> -> vector<8x128xf32>
      %58 = arith.addf %55, %57 : vector<8x128xf32>
      %59 = arith.addf %58, %9 : vector<8x128xf32>
      %cst_34 = arith.constant dense<0xFF800000> : vector<8xf32>
      %60 = vector.multi_reduction <maximumf>, %59, %cst_34 [1] : vector<8x128xf32> to vector<8xf32>
      %61 = vector.shape_cast %60 : vector<8xf32> to vector<8x1xf32>
      %62 = vector.broadcast %61 : vector<8x1xf32> to vector<8x128xf32>
      %63 = arith.subf %59, %62 : vector<8x128xf32>
      %64 = math.exp %63 : vector<8x128xf32>
      %cst_35 = arith.constant dense<0.000000e+00> : vector<8xf32>
      %65 = vector.multi_reduction <add>, %64, %cst_35 [1] : vector<8x128xf32> to vector<8xf32>
      %66 = vector.shape_cast %65 : vector<8xf32> to vector<8x1xf32>
      %67 = math.log %66 : vector<8x1xf32>
      %68 = vector.broadcast %67 : vector<8x1xf32> to vector<8x128xf32>
      %69 = arith.subf %63, %68 : vector<8x128xf32>
      %70 = arith.index_cast %44 : i32 to index
      %c0_36 = arith.constant 0 : index
      %71 = vector.load %arg7[%70, %c0_36] : memref<128x128xf32, #tpu.memory_space<vmem>>, vector<8x128xf32>
      tpu.vector_store %arg7[%70, %c0_36], %69 {strides = array<i32>} : memref<128x128xf32, #tpu.memory_space<vmem>>, vector<8x128xf32>,
    }
    %c8_i32_7 = arith.constant 8 : i32
    return
  }
}

</mosaic_0001>

<llo_original>
// kernel: bilstm_forward.1
$region0: #{bilstm_forward.1}
  #allocation0 [shape = 'u32[]', space=smem, size = 0x4, offset = 0x4, fixed_abs, tag = 'smem constant byte address 0x4 - core index']
  #allocation1 [shape = 'u32[144,128]{1,0:T(1,128)}', space=vmem, size = 0x12000, scoped, tag = 'internal scratch']
  #allocation2 [shape = 'f32[128,128]{1,0:T(8,128)}', space=vmem, size = 0x10000, scoped, tag = 'scratch operand']
  %s0 = inlined_call_operand.vmem [shape: f32[128,128], index: 0, kind: input, shape index: {}]
  %s1 = inlined_call_operand.vmem [shape: f32[128,512], index: 1, kind: input, shape index: {}]
  %s2 = inlined_call_operand.vmem [shape: f32[128,512], index: 2, kind: input, shape index: {}]
  %s3 = inlined_call_operand.vmem [shape: f32[1,512], index: 3, kind: input, shape index: {}]
  %s4 = inlined_call_operand.vmem [shape: f32[64,128], index: 4, kind: input, shape index: {}]
  %s5 = inlined_call_operand.vmem [shape: f32[64,128], index: 5, kind: input, shape index: {}]
  %s6 = inlined_call_operand.vmem [shape: f32[1,128], index: 6, kind: input, shape index: {}]
  %s7 = inlined_call_operand.vmem [shape: f32[128,128], index: 7, kind: output, shape index: {}]
  %s8 = sld [smem:[#allocation0]]
  $region52: #{bilstm_forward.1} parent=0
    _
  %s10 = ssub.s32 1, %s8
  %s11 = scalar_select 0, %s10, %s8
  // Predicated region
  $region2: #{bilstm_forward.1} parent=0 // pred_check
    _
  $region3: #{bilstm_forward.1} parent=0 // pred_check_branch
    %13 = sbr.rel (0) target = $region5
  $region4: #{bilstm_forward.1} parent=0 // pred_region
    _
  $region5: #{bilstm_forward.1} parent=0 // pred_fallthru
    _
  // Predicated region
  $region6: #{bilstm_forward.1} parent=0 // pred_check
    _
  $region7: #{bilstm_forward.1} parent=0 // pred_check_branch
    %15 = sbr.rel (0) target = $region9
  $region8: #{bilstm_forward.1} parent=0 // pred_region
    _
  $region9: #{bilstm_forward.1} parent=0 // pred_fallthru
    _
  // Predicated region
  $region10: #{bilstm_forward.1} parent=0 // pred_check
    _
  $region11: #{bilstm_forward.1} parent=0 // pred_check_branch
    %17 = sbr.rel (0) target = $region13
  $region12: #{bilstm_forward.1} parent=0 // pred_region
    _
  $region13: #{bilstm_forward.1} parent=0 // pred_fallthru
    _
  // Predicated region
  $region14: #{bilstm_forward.1} parent=0 // pred_check
    _
  $region15: #{bilstm_forward.1} parent=0 // pred_check_branch
    %19 = sbr.rel (0) target = $region17
  $region16: #{bilstm_forward.1} parent=0 // pred_region
    _
  $region17: #{bilstm_forward.1} parent=0 // pred_fallthru
    _
  // Predicated region
  $region18: #{bilstm_forward.1} parent=0 // pred_check
    _
  $region19: #{bilstm_forward.1} parent=0 // pred_check_branch
    %21 = sbr.rel (0) target = $region21
  $region20: #{bilstm_forward.1} parent=0 // pred_region
    _
  $region21: #{bilstm_forward.1} parent=0 // pred_fallthru
    _
  // Predicated region
  $region22: #{bilstm_forward.1} parent=0 // pred_check
    _
  $region23: #{bilstm_forward.1} parent=0 // pred_check_branch
    %23 = sbr.rel (0) target = $region25
  $region24: #{bilstm_forward.1} parent=0 // pred_region
    _
  $region25: #{bilstm_forward.1} parent=0 // pred_fallthru
    _
  // Predicated region
  $region26: #{bilstm_forward.1} parent=0 // pred_check
    _
  $region27: #{bilstm_forward.1} parent=0 // pred_check_branch
    %25 = sbr.rel (0) target = $region29
  $region28: #{bilstm_forward.1} parent=0 // pred_region
    _
  $region29: #{bilstm_forward.1} parent=0 // pred_fallthru
    _
  %v26 = vld [vmem:[%s3] sm:$0xf]
  %v28 = vlaneseq
  %v29 = vshrl.u32 %v28, 7
  %v30 = vsub.s32 0, %v29
  %v31 = vrot.slane %v26, %v30
  %v32 = vlaneseq
  %v33 = vshrl.u32 %v32, 7
  %v34 = vsub.s32 1, %v33
  %v35 = vrot.slane %v26, %v34
  %v36 = vlaneseq
  %v37 = vshrl.u32 %v36, 7
  %v38 = vsub.s32 2, %v37
  %v39 = vrot.slane %v26, %v38
  %v40 = vlaneseq
  %v41 = vshrl.u32 %v40, 7
  %v42 = vsub.s32 3, %v41
  %v43 = vrot.slane %v26, %v42
  loop: start=0, step=1, limit=4
  $region30: #{bilstm_forward.1} parent=0 // loop_pre_header
    _
  $region31: #{bilstm_forward.1} parent=0 // loop_header
    %s49 = sphi 0, %s53
    %p50 = scmp.ge.s32.totalorder %s49, 4
    %v54 = vphi 0.0, %v1837
    %v55 = vphi 0.0, %v1835
  $region32: #{bilstm_forward.1} parent=0 // loop_header_branch
    %52 = sbr.rel (%p50) target = $region36
  $region33: #{bilstm_forward.1} parent=0 // loop_body
    %s56 = smul.u32 %s49, 4
    %s57 = smul.u32 %s49, 32
    %s58 = scalar_lea.vmem %s0, %s57
    %v59 = vld [vmem:[%s58] sm:$0xff]
    %v60 = vld [vmem:[%s2] sm:$0xff]
    %v61 = vld [vmem:[%s2 + $0x8] sm:$0xff]
    %v62 = vld [vmem:[%s2 + $0x10] sm:$0xff]
    %v63 = vld [vmem:[%s2 + $0x18] sm:$0xff]
    %v64 = vld [vmem:[%s2 + $0x20] sm:$0xff]
    %v65 = vld [vmem:[%s2 + $0x28] sm:$0xff]
    %v66 = vld [vmem:[%s2 + $0x30] sm:$0xff]
    %v67 = vld [vmem:[%s2 + $0x38] sm:$0xff]
    %v68 = vld [vmem:[%s2 + $0x40] sm:$0xff]
    %v69 = vld [vmem:[%s2 + $0x48] sm:$0xff]
    %v70 = vld [vmem:[%s2 + $0x50] sm:$0xff]
    %v71 = vld [vmem:[%s2 + $0x58] sm:$0xff]
    %v72 = vld [vmem:[%s2 + $0x60] sm:$0xff]
    %v73 = vld [vmem:[%s2 + $0x68] sm:$0xff]
    %v74 = vld [vmem:[%s2 + $0x70] sm:$0xff]
    %v75 = vld [vmem:[%s2 + $0x78] sm:$0xff]
    %v76 = vld [vmem:[%s2 + $0x80] sm:$0xff]
    %v77 = vld [vmem:[%s2 + $0x88] sm:$0xff]
    %v78 = vld [vmem:[%s2 + $0x90] sm:$0xff]
    %v79 = vld [vmem:[%s2 + $0x98] sm:$0xff]
    %v80 = vld [vmem:[%s2 + $0xa0] sm:$0xff]
    %v81 = vld [vmem:[%s2 + $0xa8] sm:$0xff]
    %v82 = vld [vmem:[%s2 + $0xb0] sm:$0xff]
    %v83 = vld [vmem:[%s2 + $0xb8] sm:$0xff]
    %v84 = vld [vmem:[%s2 + $0xc0] sm:$0xff]
    %v85 = vld [vmem:[%s2 + $0xc8] sm:$0xff]
    %v86 = vld [vmem:[%s2 + $0xd0] sm:$0xff]
    %v87 = vld [vmem:[%s2 + $0xd8] sm:$0xff]
    %v88 = vld [vmem:[%s2 + $0xe0] sm:$0xff]
    %v89 = vld [vmem:[%s2 + $0xe8] sm:$0xff]
    %v90 = vld [vmem:[%s2 + $0xf0] sm:$0xff]
    %v91 = vld [vmem:[%s2 + $0xf8] sm:$0xff]
    %v92 = vld [vmem:[%s2 + $0x100] sm:$0xff]
    %v93 = vld [vmem:[%s2 + $0x108] sm:$0xff]
    %v94 = vld [vmem:[%s2 + $0x110] sm:$0xff]
    %v95 = vld [vmem:[%s2 + $0x118] sm:$0xff]
    %v96 = vld [vmem:[%s2 + $0x120] sm:$0xff]
    %v97 = vld [vmem:[%s2 + $0x128] sm:$0xff]
    %v98 = vld [vmem:[%s2 + $0x130] sm:$0xff]
    %v99 = vld [vmem:[%s2 + $0x138] sm:$0xff]
    %v100 = vld [vmem:[%s2 + $0x140] sm:$0xff]
    %v101 = vld [vmem:[%s2 + $0x148] sm:$0xff]
    %v102 = vld [vmem:[%s2 + $0x150] sm:$0xff]
    %v103 = vld [vmem:[%s2 + $0x158] sm:$0xff]
    %v104 = vld [vmem:[%s2 + $0x160] sm:$0xff]
    %v105 = vld [vmem:[%s2 + $0x168] sm:$0xff]
    %v106 = vld [vmem:[%s2 + $0x170] sm:$0xff]
    %v107 = vld [vmem:[%s2 + $0x178] sm:$0xff]
    %v108 = vld [vmem:[%s2 + $0x180] sm:$0xff]
    %v109 = vld [vmem:[%s2 + $0x188] sm:$0xff]
    %v110 = vld [vmem:[%s2 + $0x190] sm:$0xff]
    %v111 = vld [vmem:[%s2 + $0x198] sm:$0xff]
    %v112 = vld [vmem:[%s2 + $0x1a0] sm:$0xff]
    %v113 = vld [vmem:[%s2 + $0x1a8] sm:$0xff]
    %v114 = vld [vmem:[%s2 + $0x1b0] sm:$0xff]
    %v115 = vld [vmem:[%s2 + $0x1b8] sm:$0xff]
    %v116 = vld [vmem:[%s2 + $0x1c0] sm:$0xff]
    %v117 = vld [vmem:[%s2 + $0x1c8] sm:$0xff]
    %v118 = vld [vmem:[%s2 + $0x1d0] sm:$0xff]
    %v119 = vld [vmem:[%s2 + $0x1d8] sm:$0xff]
    %v120 = vld [vmem:[%s2 + $0x1e0] sm:$0xff]
    %v121 = vld [vmem:[%s2 + $0x1e8] sm:$0xff]
    %v122 = vld [vmem:[%s2 + $0x1f0] sm:$0xff]
    %v123 = vld [vmem:[%s2 + $0x1f8] sm:$0xff]
    %v124 = vld [vmem:[%s1] sm:$0xff]
    %v125 = vld [vmem:[%s1 + $0x8] sm:$0xff]
    %v126 = vld [vmem:[%s1 + $0x10] sm:$0xff]
    %v127 = vld [vmem:[%s1 + $0x18] sm:$0xff]
    %v128 = vld [vmem:[%s1 + $0x20] sm:$0xff]
    %v129 = vld [vmem:[%s1 + $0x28] sm:$0xff]
    %v130 = vld [vmem:[%s1 + $0x30] sm:$0xff]
    %v131 = vld [vmem:[%s1 + $0x38] sm:$0xff]
    %v132 = vld [vmem:[%s1 + $0x40] sm:$0xff]
    %v133 = vld [vmem:[%s1 + $0x48] sm:$0xff]
    %v134 = vld [vmem:[%s1 + $0x50] sm:$0xff]
    %v135 = vld [vmem:[%s1 + $0x58] sm:$0xff]
    %v136 = vld [vmem:[%s1 + $0x60] sm:$0xff]
    %v137 = vld [vmem:[%s1 + $0x68] sm:$0xff]
    %v138 = vld [vmem:[%s1 + $0x70] sm:$0xff]
    %v139 = vld [vmem:[%s1 + $0x78] sm:$0xff]
    %v140 = vld [vmem:[%s1 + $0x80] sm:$0xff]
    %v141 = vld [vmem:[%s1 + $0x88] sm:$0xff]
    %v142 = vld [vmem:[%s1 + $0x90] sm:$0xff]
    %v143 = vld [vmem:[%s1 + $0x98] sm:$0xff]
    %v144 = vld [vmem:[%s1 + $0xa0] sm:$0xff]
    %v145 = vld [vmem:[%s1 + $0xa8] sm:$0xff]
    %v146 = vld [vmem:[%s1 + $0xb0] sm:$0xff]
    %v147 = vld [vmem:[%s1 + $0xb8] sm:$0xff]
    %v148 = vld [vmem:[%s1 + $0xc0] sm:$0xff]
    %v149 = vld [vmem:[%s1 + $0xc8] sm:$0xff]
    %v150 = vld [vmem:[%s1 + $0xd0] sm:$0xff]
    %v151 = vld [vmem:[%s1 + $0xd8] sm:$0xff]
    %v152 = vld [vmem:[%s1 + $0xe0] sm:$0xff]
    %v153 = vld [vmem:[%s1 + $0xe8] sm:$0xff]
    %v154 = vld [vmem:[%s1 + $0xf0] sm:$0xff]
    %v155 = vld [vmem:[%s1 + $0xf8] sm:$0xff]
    %v156 = vld [vmem:[%s1 + $0x100] sm:$0xff]
    %v157 = vld [vmem:[%s1 + $0x108] sm:$0xff]
    %v158 = vld [vmem:[%s1 + $0x110] sm:$0xff]
    %v159 = vld [vmem:[%s1 + $0x118] sm:$0xff]
    %v160 = vld [vmem:[%s1 + $0x120] sm:$0xff]
    %v161 = vld [vmem:[%s1 + $0x128] sm:$0xff]
    %v162 = vld [vmem:[%s1 + $0x130] sm:$0xff]
    %v163 = vld [vmem:[%s1 + $0x138] sm:$0xff]
    %v164 = vld [vmem:[%s1 + $0x140] sm:$0xff]
    %v165 = vld [vmem:[%s1 + $0x148] sm:$0xff]
    %v166 = vld [vmem:[%s1 + $0x150] sm:$0xff]
    %v167 = vld [vmem:[%s1 + $0x158] sm:$0xff]
    %v168 = vld [vmem:[%s1 + $0x160] sm:$0xff]
    %v169 = vld [vmem:[%s1 + $0x168] sm:$0xff]
    %v170 = vld [vmem:[%s1 + $0x170] sm:$0xff]
    %v171 = vld [vmem:[%s1 + $0x178] sm:$0xff]
    %v172 = vld [vmem:[%s1 + $0x180] sm:$0xff]
    %v173 = vld [vmem:[%s1 + $0x188] sm:$0xff]
    %v174 = vld [vmem:[%s1 + $0x190] sm:$0xff]
    %v175 = vld [vmem:[%s1 + $0x198] sm:$0xff]
    %v176 = vld [vmem:[%s1 + $0x1a0] sm:$0xff]
    %v177 = vld [vmem:[%s1 + $0x1a8] sm:$0xff]
    %v178 = vld [vmem:[%s1 + $0x1b0] sm:$0xff]
    %v179 = vld [vmem:[%s1 + $0x1b8] sm:$0xff]
    %v180 = vld [vmem:[%s1 + $0x1c0] sm:$0xff]
    %v181 = vld [vmem:[%s1 + $0x1c8] sm:$0xff]
    %v182 = vld [vmem:[%s1 + $0x1d0] sm:$0xff]
    %v183 = vld [vmem:[%s1 + $0x1d8] sm:$0xff]
    %v184 = vld [vmem:[%s1 + $0x1e0] sm:$0xff]
    %v185 = vld [vmem:[%s1 + $0x1e8] sm:$0xff]
    %v186 = vld [vmem:[%s1 + $0x1f0] sm:$0xff]
    %v187 = vld [vmem:[%s1 + $0x1f8] sm:$0xff]
    %188 = vmatprep.subr.mxu0 %v125
    %189 = vmatpush1.msra.mxu0 %v124
    %190 = vmatprep.subr.mxu0 %v129
    %191 = vmatpush1.msra.mxu0 %v128
    %192 = vmatprep.subr.mxu0 %v133
    %193 = vmatpush1.msra.mxu0 %v132
    %194 = vmatprep.subr.mxu0 %v137
    %195 = vmatpush1.msra.mxu0 %v136
    %196 = vmatprep.subr.mxu0 %v141
    %197 = vmatpush1.msra.mxu0 %v140
    %198 = vmatprep.subr.mxu0 %v145
    %199 = vmatpush1.msra.mxu0 %v144
    %200 = vmatprep.subr.mxu0 %v149
    %201 = vmatpush1.msra.mxu0 %v148
    %202 = vmatprep.subr.mxu0 %v153
    %203 = vmatpush1.msra.mxu0 %v152
    %204 = vmatprep.subr.mxu0 %v157
    %205 = vmatpush1.msra.mxu0 %v156
    %206 = vmatprep.subr.mxu0 %v161
    %207 = vmatpush1.msra.mxu0 %v160
    %208 = vmatprep.subr.mxu0 %v165
    %209 = vmatpush1.msra.mxu0 %v164
    %210 = vmatprep.subr.mxu0 %v169
    %211 = vmatpush1.msra.mxu0 %v168
    %212 = vmatprep.subr.mxu0 %v173
    %213 = vmatpush1.msra.mxu0 %v172
    %214 = vmatprep.subr.mxu0 %v177
    %215 = vmatpush1.msra.mxu0 %v176
    %216 = vmatprep.subr.mxu0 %v181
    %217 = vmatpush1.msra.mxu0 %v180
    %218 = vmatprep.subr.mxu0 %v185
    %219 = vmatpush1.msra.mxu0 %v184
    %220 = vmatprep.subr.mxu0 0.0
    %221 = vmatpush1.msra.mxu0 0.0
    %222 = vmatprep.subr.mxu0 0.0
    %223 = vmatpush1.msra.mxu0 0.0
    %224 = vmatprep.subr.mxu0 0.0
    %225 = vmatpush1.msra.mxu0 0.0
    %226 = vmatprep.subr.mxu0 0.0
    %227 = vmatpush1.msra.mxu0 0.0
    %228 = vmatprep.subr.mxu0 0.0
    %229 = vmatpush1.msra.mxu0 0.0
    %230 = vmatprep.subr.mxu0 0.0
    %231 = vmatpush1.msra.mxu0 0.0
    %232 = vmatprep.subr.mxu0 0.0
    %233 = vmatpush1.msra.mxu0 0.0
    %234 = vmatprep.subr.mxu0 0.0
    %235 = vmatpush1.msra.mxu0 0.0
    %236 = vmatprep.subr.mxu0 0.0
    %237 = vmatpush1.msra.mxu0 0.0
    %238 = vmatprep.subr.mxu0 0.0
    %239 = vmatpush1.msra.mxu0 0.0
    %240 = vmatprep.subr.mxu0 0.0
    %241 = vmatpush1.msra.mxu0 0.0
    %242 = vmatprep.subr.mxu0 0.0
    %243 = vmatpush1.msra.mxu0 0.0
    %244 = vmatprep.subr.mxu0 0.0
    %245 = vmatpush1.msra.mxu0 0.0
    %246 = vmatprep.subr.mxu0 0.0
    %247 = vmatpush1.msra.mxu0 0.0
    %248 = vmatprep.subr.mxu0 0.0
    %249 = vmatpush1.msra.mxu0 0.0
    %250 = vmatprep.subr.mxu0 0.0
    %251 = vmatpush1.msra.mxu0 0.0
    %252 = vmatprep.mubr.f32.mxu0 0.0
    %253 = vmatmul.mubr.f32.gmra.mrb[0].mxu0 %v59
    %v254 = vpop.f32.mrb[0].mxu0
    %v255 = vadd.f32 0.0, %v254
    %v256 = vpop.f32.mrb[0].mxu0
    %v257 = vadd.f32 0.0, %v256
    %258 = vdwg.mxu0
    %259 = vmatprep.subr.mxu0 %v127
    %260 = vmatpush1.msra.mxu0 %v126
    %261 = vmatprep.subr.mxu0 %v131
    %262 = vmatpush1.msra.mxu0 %v130
    %263 = vmatprep.subr.mxu0 %v135
    %264 = vmatpush1.msra.mxu0 %v134
    %265 = vmatprep.subr.mxu0 %v139
    %266 = vmatpush1.msra.mxu0 %v138
    %267 = vmatprep.subr.mxu0 %v143
    %268 = vmatpush1.msra.mxu0 %v142
    %269 = vmatprep.subr.mxu0 %v147
    %270 = vmatpush1.msra.mxu0 %v146
    %271 = vmatprep.subr.mxu0 %v151
    %272 = vmatpush1.msra.mxu0 %v150
    %273 = vmatprep.subr.mxu0 %v155
    %274 = vmatpush1.msra.mxu0 %v154
    %275 = vmatprep.subr.mxu0 %v159
    %276 = vmatpush1.msra.mxu0 %v158
    %277 = vmatprep.subr.mxu0 %v163
    %278 = vmatpush1.msra.mxu0 %v162
    %279 = vmatprep.subr.mxu0 %v167
    %280 = vmatpush1.msra.mxu0 %v166
    %281 = vmatprep.subr.mxu0 %v171
    %282 = vmatpush1.msra.mxu0 %v170
    %283 = vmatprep.subr.mxu0 %v175
    %284 = vmatpush1.msra.mxu0 %v174
    %285 = vmatprep.subr.mxu0 %v179
    %286 = vmatpush1.msra.mxu0 %v178
    %287 = vmatprep.subr.mxu0 %v183
    %288 = vmatpush1.msra.mxu0 %v182
    %289 = vmatprep.subr.mxu0 %v187
    %290 = vmatpush1.msra.mxu0 %v186
    %291 = vmatprep.subr.mxu0 0.0
    %292 = vmatpush1.msra.mxu0 0.0
    %293 = vmatprep.subr.mxu0 0.0
    %294 = vmatpush1.msra.mxu0 0.0
    %295 = vmatprep.subr.mxu0 0.0
    %296 = vmatpush1.msra.mxu0 0.0
    %297 = vmatprep.subr.mxu0 0.0
    %298 = vmatpush1.msra.mxu0 0.0
    %299 = vmatprep.subr.mxu0 0.0
    %300 = vmatpush1.msra.mxu0 0.0
    %301 = vmatprep.subr.mxu0 0.0
    %302 = vmatpush1.msra.mxu0 0.0
    %303 = vmatprep.subr.mxu0 0.0
    %304 = vmatpush1.msra.mxu0 0.0
    %305 = vmatprep.subr.mxu0 0.0
    %306 = vmatpush1.msra.mxu0 0.0
    %307 = vmatprep.subr.mxu0 0.0
    %308 = vmatpush1.msra.mxu0 0.0
    %309 = vmatprep.subr.mxu0 0.0
    %310 = vmatpush1.msra.mxu0 0.0
    %311 = vmatprep.subr.mxu0 0.0
    %312 = vmatpush1.msra.mxu0 0.0
    %313 = vmatprep.subr.mxu0 0.0
    %314 = vmatpush1.msra.mxu0 0.0
    %315 = vmatprep.subr.mxu0 0.0
    %316 = vmatpush1.msra.mxu0 0.0
    %317 = vmatprep.subr.mxu0 0.0
    %318 = vmatpush1.msra.mxu0 0.0
    %319 = vmatprep.subr.mxu0 0.0
    %320 = vmatpush1.msra.mxu0 0.0
    %321 = vmatprep.subr.mxu0 0.0
    %322 = vmatpush1.msra.mxu0 0.0
    %323 = vmatprep.mubr.f32.mxu0 0.0
    %324 = vmatmul.mubr.f32.gmra.mrb[0].mxu0 %v59
    %v325 = vpop.f32.mrb[0].mxu0
    %v326 = vadd.f32 0.0, %v325
    %v327 = vpop.f32.mrb[0].mxu0
    %v328 = vadd.f32 0.0, %v327
    %329 = vdwg.mxu0
    %330 = vmatprep.subr.mxu0 %v61
    %331 = vmatpush1.msra.mxu0 %v60
    %332 = vmatprep.subr.mxu0 %v65
    %333 = vmatpush1.msra.mxu0 %v64
    %334 = vmatprep.subr.mxu0 %v69
    %335 = vmatpush1.msra.mxu0 %v68
    %336 = vmatprep.subr.mxu0 %v73
    %337 = vmatpush1.msra.mxu0 %v72
    %338 = vmatprep.subr.mxu0 %v77
    %339 = vmatpush1.msra.mxu0 %v76
    %340 = vmatprep.subr.mxu0 %v81
    %341 = vmatpush1.msra.mxu0 %v80
    %342 = vmatprep.subr.mxu0 %v85
    %343 = vmatpush1.msra.mxu0 %v84
    %344 = vmatprep.subr.mxu0 %v89
    %345 = vmatpush1.msra.mxu0 %v88
    %346 = vmatprep.subr.mxu0 %v93
    %347 = vmatpush1.msra.mxu0 %v92
    %348 = vmatprep.subr.mxu0 %v97
    %349 = vmatpush1.msra.mxu0 %v96
    %350 = vmatprep.subr.mxu0 %v101
    %351 = vmatpush1.msra.mxu0 %v100
    %352 = vmatprep.subr.mxu0 %v105
    %353 = vmatpush1.msra.mxu0 %v104
    %354 = vmatprep.subr.mxu0 %v109
    %355 = vmatpush1.msra.mxu0 %v108
    %356 = vmatprep.subr.mxu0 %v113
    %357 = vmatpush1.msra.mxu0 %v112
    %358 = vmatprep.subr.mxu0 %v117
    %359 = vmatpush1.msra.mxu0 %v116
    %360 = vmatprep.subr.mxu0 %v121
    %361 = vmatpush1.msra.mxu0 %v120
    %362 = vmatprep.subr.mxu0 0.0
    %363 = vmatpush1.msra.mxu0 0.0
    %364 = vmatprep.subr.mxu0 0.0
    %365 = vmatpush1.msra.mxu0 0.0
    %366 = vmatprep.subr.mxu0 0.0
    %367 = vmatpush1.msra.mxu0 0.0
    %368 = vmatprep.subr.mxu0 0.0
    %369 = vmatpush1.msra.mxu0 0.0
    %370 = vmatprep.subr.mxu0 0.0
    %371 = vmatpush1.msra.mxu0 0.0
    %372 = vmatprep.subr.mxu0 0.0
    %373 = vmatpush1.msra.mxu0 0.0
    %374 = vmatprep.subr.mxu0 0.0
    %375 = vmatpush1.msra.mxu0 0.0
    %376 = vmatprep.subr.mxu0 0.0
    %377 = vmatpush1.msra.mxu0 0.0
    %378 = vmatprep.subr.mxu0 0.0
    %379 = vmatpush1.msra.mxu0 0.0
    %380 = vmatprep.subr.mxu0 0.0
    %381 = vmatpush1.msra.mxu0 0.0
    %382 = vmatprep.subr.mxu0 0.0
    %383 = vmatpush1.msra.mxu0 0.0
    %384 = vmatprep.subr.mxu0 0.0
    %385 = vmatpush1.msra.mxu0 0.0
    %386 = vmatprep.subr.mxu0 0.0
    %387 = vmatpush1.msra.mxu0 0.0
    %388 = vmatprep.subr.mxu0 0.0
    %389 = vmatpush1.msra.mxu0 0.0
    %390 = vmatprep.subr.mxu0 0.0
    %391 = vmatpush1.msra.mxu0 0.0
    %392 = vmatprep.subr.mxu0 0.0
    %393 = vmatpush1.msra.mxu0 0.0
    %394 = vmatprep.mubr.f32.mxu0 0.0
    %395 = vmatmul.mubr.f32.gmra.mrb[0].mxu0 %v54
    %v396 = vpop.f32.mrb[0].mxu0
    %v397 = vadd.f32 %v255, %v396
    %v398 = vpop.f32.mrb[0].mxu0
    %v399 = vadd.f32 %v257, %v398
    %400 = vdwg.mxu0
    %401 = vmatprep.subr.mxu0 %v63
    %402 = vmatpush1.msra.mxu0 %v62
    %403 = vmatprep.subr.mxu0 %v67
    %404 = vmatpush1.msra.mxu0 %v66
    %405 = vmatprep.subr.mxu0 %v71
    %406 = vmatpush1.msra.mxu0 %v70
    %407 = vmatprep.subr.mxu0 %v75
    %408 = vmatpush1.msra.mxu0 %v74
    %409 = vmatprep.subr.mxu0 %v79
    %410 = vmatpush1.msra.mxu0 %v78
    %411 = vmatprep.subr.mxu0 %v83
    %412 = vmatpush1.msra.mxu0 %v82
    %413 = vmatprep.subr.mxu0 %v87
    %414 = vmatpush1.msra.mxu0 %v86
    %415 = vmatprep.subr.mxu0 %v91
    %416 = vmatpush1.msra.mxu0 %v90
    %417 = vmatprep.subr.mxu0 %v95
    %418 = vmatpush1.msra.mxu0 %v94
    %419 = vmatprep.subr.mxu0 %v99
    %420 = vmatpush1.msra.mxu0 %v98
    %421 = vmatprep.subr.mxu0 %v103
    %422 = vmatpush1.msra.mxu0 %v102
    %423 = vmatprep.subr.mxu0 %v107
    %424 = vmatpush1.msra.mxu0 %v106
    %425 = vmatprep.subr.mxu0 %v111
    %426 = vmatpush1.msra.mxu0 %v110
    %427 = vmatprep.subr.mxu0 %v115
    %428 = vmatpush1.msra.mxu0 %v114
    %429 = vmatprep.subr.mxu0 %v119
    %430 = vmatpush1.msra.mxu0 %v118
    %431 = vmatprep.subr.mxu0 %v123
    %432 = vmatpush1.msra.mxu0 %v122
    %433 = vmatprep.subr.mxu0 0.0
    %434 = vmatpush1.msra.mxu0 0.0
    %435 = vmatprep.subr.mxu0 0.0
    %436 = vmatpush1.msra.mxu0 0.0
    %437 = vmatprep.subr.mxu0 0.0
    %438 = vmatpush1.msra.mxu0 0.0
    %439 = vmatprep.subr.mxu0 0.0
    %440 = vmatpush1.msra.mxu0 0.0
    %441 = vmatprep.subr.mxu0 0.0
    %442 = vmatpush1.msra.mxu0 0.0
    %443 = vmatprep.subr.mxu0 0.0
    %444 = vmatpush1.msra.mxu0 0.0
    %445 = vmatprep.subr.mxu0 0.0
    %446 = vmatpush1.msra.mxu0 0.0
    %447 = vmatprep.subr.mxu0 0.0
    %448 = vmatpush1.msra.mxu0 0.0
    %449 = vmatprep.subr.mxu0 0.0
    %450 = vmatpush1.msra.mxu0 0.0
    %451 = vmatprep.subr.mxu0 0.0
    %452 = vmatpush1.msra.mxu0 0.0
    %453 = vmatprep.subr.mxu0 0.0
    %454 = vmatpush1.msra.mxu0 0.0
    %455 = vmatprep.subr.mxu0 0.0
    %456 = vmatpush1.msra.mxu0 0.0
    %457 = vmatprep.subr.mxu0 0.0
    %458 = vmatpush1.msra.mxu0 0.0
    %459 = vmatprep.subr.mxu0 0.0
    %460 = vmatpush1.msra.mxu0 0.0
    %461 = vmatprep.subr.mxu0 0.0
    %462 = vmatpush1.msra.mxu0 0.0
    %463 = vmatprep.subr.mxu0 0.0
    %464 = vmatpush1.msra.mxu0 0.0
    %465 = vmatprep.mubr.f32.mxu0 0.0
    %466 = vmatmul.mubr.f32.gmra.mrb[0].mxu0 %v54
    %v467 = vpop.f32.mrb[0].mxu0
    %v468 = vadd.f32 %v326, %v467
    %v469 = vpop.f32.mrb[0].mxu0
    %v470 = vadd.f32 %v328, %v469
    %471 = vdwg.mxu0
    %v472 = vadd.f32 %v397, %v31
    %v473 = vadd.f32 %v399, %v35
    %v474 = vadd.f32 %v468, %v39
    %v475 = vadd.f32 %v470, %v43
    %v476 = vxor.u32 %v472, 2147483648
    %v477 = vmul.f32 %v476, 1.442695
    %v478 = vpow.pop %v477
    %v479 = vadd.f32 %v478, 1.0
    %v480 = vrcp.pop %v479
    %v481 = vmul.f32 1.0, %v480
    %v482 = vxor.u32 %v473, 2147483648
    %v483 = vmul.f32 %v482, 1.442695
    %v484 = vpow.pop %v483
    %v485 = vadd.f32 %v484, 1.0
    %v486 = vrcp.pop %v485
    %v487 = vmul.f32 1.0, %v486
    %v488 = vtanh.pop %v474
    %v489 = vxor.u32 %v475, 2147483648
    %v490 = vmul.f32 %v489, 1.442695
    %v491 = vpow.pop %v490
    %v492 = vadd.f32 %v491, 1.0
    %v493 = vrcp.pop %v492
    %v494 = vmul.f32 1.0, %v493
    %v495 = vmul.f32 %v487, %v55
    %v496 = vmul.f32 %v481, %v488
    %v497 = vadd.f32 %v495, %v496
    %v498 = vtanh.pop %v497
    %v499 = vmul.f32 %v494, %v498
    %s500 = scalar_lea.vmem [#allocation2], %s57
    %501 = vst [vmem:[%s500] sm:$0xff] %v499
    %s502 = sadd.s32 %s56, 1
    %s503 = smul.u32 %s502, 8
    %s504 = scalar_lea.vmem %s0, %s503
    %v505 = vld [vmem:[%s504] sm:$0xff]
    %v506 = vld [vmem:[%s2] sm:$0xff]
    %v507 = vld [vmem:[%s2 + $0x8] sm:$0xff]
    %v508 = vld [vmem:[%s2 + $0x10] sm:$0xff]
    %v509 = vld [vmem:[%s2 + $0x18] sm:$0xff]
    %v510 = vld [vmem:[%s2 + $0x20] sm:$0xff]
    %v511 = vld [vmem:[%s2 + $0x28] sm:$0xff]
    %v512 = vld [vmem:[%s2 + $0x30] sm:$0xff]
    %v513 = vld [vmem:[%s2 + $0x38] sm:$0xff]
    %v514 = vld [vmem:[%s2 + $0x40] sm:$0xff]
    %v515 = vld [vmem:[%s2 + $0x48] sm:$0xff]
    %v516 = vld [vmem:[%s2 + $0x50] sm:$0xff]
    %v517 = vld [vmem:[%s2 + $0x58] sm:$0xff]
    %v518 = vld [vmem:[%s2 + $0x60] sm:$0xff]
    %v519 = vld [vmem:[%s2 + $0x68] sm:$0xff]
    %v520 = vld [vmem:[%s2 + $0x70] sm:$0xff]
    %v521 = vld [vmem:[%s2 + $0x78] sm:$0xff]
    %v522 = vld [vmem:[%s2 + $0x80] sm:$0xff]
    %v523 = vld [vmem:[%s2 + $0x88] sm:$0xff]
    %v524 = vld [vmem:[%s2 + $0x90] sm:$0xff]
    %v525 = vld [vmem:[%s2 + $0x98] sm:$0xff]
    %v526 = vld [vmem:[%s2 + $0xa0] sm:$0xff]
    %v527 = vld [vmem:[%s2 + $0xa8] sm:$0xff]
    %v528 = vld [vmem:[%s2 + $0xb0] sm:$0xff]
    %v529 = vld [vmem:[%s2 + $0xb8] sm:$0xff]
    %v530 = vld [vmem:[%s2 + $0xc0] sm:$0xff]
    %v531 = vld [vmem:[%s2 + $0xc8] sm:$0xff]
    %v532 = vld [vmem:[%s2 + $0xd0] sm:$0xff]
    %v533 = vld [vmem:[%s2 + $0xd8] sm:$0xff]
    %v534 = vld [vmem:[%s2 + $0xe0] sm:$0xff]
    %v535 = vld [vmem:[%s2 + $0xe8] sm:$0xff]
    %v536 = vld [vmem:[%s2 + $0xf0] sm:$0xff]
    %v537 = vld [vmem:[%s2 + $0xf8] sm:$0xff]
    %v538 = vld [vmem:[%s2 + $0x100] sm:$0xff]
    %v539 = vld [vmem:[%s2 + $0x108] sm:$0xff]
    %v540 = vld [vmem:[%s2 + $0x110] sm:$0xff]
    %v541 = vld [vmem:[%s2 + $0x118] sm:$0xff]
    %v542 = vld [vmem:[%s2 + $0x120] sm:$0xff]
    %v543 = vld [vmem:[%s2 + $0x128] sm:$0xff]
    %v544 = vld [vmem:[%s2 + $0x130] sm:$0xff]
    %v545 = vld [vmem:[%s2 + $0x138] sm:$0xff]
    %v546 = vld [vmem:[%s2 + $0x140] sm:$0xff]
    %v547 = vld [vmem:[%s2 + $0x148] sm:$0xff]
    %v548 = vld [vmem:[%s2 + $0x150] sm:$0xff]
    %v549 = vld [vmem:[%s2 + $0x158] sm:$0xff]
    %v550 = vld [vmem:[%s2 + $0x160] sm:$0xff]
    %v551 = vld [vmem:[%s2 + $0x168] sm:$0xff]
    %v552 = vld [vmem:[%s2 + $0x170] sm:$0xff]
    %v553 = vld [vmem:[%s2 + $0x178] sm:$0xff]
    %v554 = vld [vmem:[%s2 + $0x180] sm:$0xff]
    %v555 = vld [vmem:[%s2 + $0x188] sm:$0xff]
    %v556 = vld [vmem:[%s2 + $0x190] sm:$0xff]
    %v557 = vld [vmem:[%s2 + $0x198] sm:$0xff]
    %v558 = vld [vmem:[%s2 + $0x1a0] sm:$0xff]
    %v559 = vld [vmem:[%s2 + $0x1a8] sm:$0xff]
    %v560 = vld [vmem:[%s2 + $0x1b0] sm:$0xff]
    %v561 = vld [vmem:[%s2 + $0x1b8] sm:$0xff]
    %v562 = vld [vmem:[%s2 + $0x1c0] sm:$0xff]
    %v563 = vld [vmem:[%s2 + $0x1c8] sm:$0xff]
    %v564 = vld [vmem:[%s2 + $0x1d0] sm:$0xff]
    %v565 = vld [vmem:[%s2 + $0x1d8] sm:$0xff]
    %v566 = vld [vmem:[%s2 + $0x1e0] sm:$0xff]
    %v567 = vld [vmem:[%s2 + $0x1e8] sm:$0xff]
    %v568 = vld [vmem:[%s2 + $0x1f0] sm:$0xff]
    %v569 = vld [vmem:[%s2 + $0x1f8] sm:$0xff]
    %v570 = vld [vmem:[%s1] sm:$0xff]
    %v571 = vld [vmem:[%s1 + $0x8] sm:$0xff]
    %v572 = vld [vmem:[%s1 + $0x10] sm:$0xff]
    %v573 = vld [vmem:[%s1 + $0x18] sm:$0xff]
    %v574 = vld [vmem:[%s1 + $0x20] sm:$0xff]
    %v575 = vld [vmem:[%s1 + $0x28] sm:$0xff]
    %v576 = vld [vmem:[%s1 + $0x30] sm:$0xff]
    %v577 = vld [vmem:[%s1 + $0x38] sm:$0xff]
    %v578 = vld [vmem:[%s1 + $0x40] sm:$0xff]
    %v579 = vld [vmem:[%s1 + $0x48] sm:$0xff]
    %v580 = vld [vmem:[%s1 + $0x50] sm:$0xff]
    %v581 = vld [vmem:[%s1 + $0x58] sm:$0xff]
    %v582 = vld [vmem:[%s1 + $0x60] sm:$0xff]
    %v583 = vld [vmem:[%s1 + $0x68] sm:$0xff]
    %v584 = vld [vmem:[%s1 + $0x70] sm:$0xff]
    %v585 = vld [vmem:[%s1 + $0x78] sm:$0xff]
    %v586 = vld [vmem:[%s1 + $0x80] sm:$0xff]
    %v587 = vld [vmem:[%s1 + $0x88] sm:$0xff]
    %v588 = vld [vmem:[%s1 + $0x90] sm:$0xff]
    %v589 = vld [vmem:[%s1 + $0x98] sm:$0xff]
    %v590 = vld [vmem:[%s1 + $0xa0] sm:$0xff]
    %v591 = vld [vmem:[%s1 + $0xa8] sm:$0xff]
    %v592 = vld [vmem:[%s1 + $0xb0] sm:$0xff]
    %v593 = vld [vmem:[%s1 + $0xb8] sm:$0xff]
    %v594 = vld [vmem:[%s1 + $0xc0] sm:$0xff]
    %v595 = vld [vmem:[%s1 + $0xc8] sm:$0xff]
    %v596 = vld [vmem:[%s1 + $0xd0] sm:$0xff]
    %v597 = vld [vmem:[%s1 + $0xd8] sm:$0xff]
    %v598 = vld [vmem:[%s1 + $0xe0] sm:$0xff]
    %v599 = vld [vmem:[%s1 + $0xe8] sm:$0xff]
    %v600 = vld [vmem:[%s1 + $0xf0] sm:$0xff]
    %v601 = vld [vmem:[%s1 + $0xf8] sm:$0xff]
    %v602 = vld [vmem:[%s1 + $0x100] sm:$0xff]
    %v603 = vld [vmem:[%s1 + $0x108] sm:$0xff]
    %v604 = vld [vmem:[%s1 + $0x110] sm:$0xff]
    %v605 = vld [vmem:[%s1 + $0x118] sm:$0xff]
    %v606 = vld [vmem:[%s1 + $0x120] sm:$0xff]
    %v607 = vld [vmem:[%s1 + $0x128] sm:$0xff]
    %v608 = vld [vmem:[%s1 + $0x130] sm:$0xff]
    %v609 = vld [vmem:[%s1 + $0x138] sm:$0xff]
    %v610 = vld [vmem:[%s1 + $0x140] sm:$0xff]
    %v611 = vld [vmem:[%s1 + $0x148] sm:$0xff]
    %v612 = vld [vmem:[%s1 + $0x150] sm:$0xff]
    %v613 = vld [vmem:[%s1 + $0x158] sm:$0xff]
    %v614 = vld [vmem:[%s1 + $0x160] sm:$0xff]
    %v615 = vld [vmem:[%s1 + $0x168] sm:$0xff]
    %v616 = vld [vmem:[%s1 + $0x170] sm:$0xff]
    %v617 = vld [vmem:[%s1 + $0x178] sm:$0xff]
    %v618 = vld [vmem:[%s1 + $0x180] sm:$0xff]
    %v619 = vld [vmem:[%s1 + $0x188] sm:$0xff]
    %v620 = vld [vmem:[%s1 + $0x190] sm:$0xff]
    %v621 = vld [vmem:[%s1 + $0x198] sm:$0xff]
    %v622 = vld [vmem:[%s1 + $0x1a0] sm:$0xff]
    %v623 = vld [vmem:[%s1 + $0x1a8] sm:$0xff]
    %v624 = vld [vmem:[%s1 + $0x1b0] sm:$0xff]
    %v625 = vld [vmem:[%s1 + $0x1b8] sm:$0xff]
    %v626 = vld [vmem:[%s1 + $0x1c0] sm:$0xff]
    %v627 = vld [vmem:[%s1 + $0x1c8] sm:$0xff]
    %v628 = vld [vmem:[%s1 + $0x1d0] sm:$0xff]
    %v629 = vld [vmem:[%s1 + $0x1d8] sm:$0xff]
    %v630 = vld [vmem:[%s1 + $0x1e0] sm:$0xff]
    %v631 = vld [vmem:[%s1 + $0x1e8] sm:$0xff]
    %v632 = vld [vmem:[%s1 + $0x1f0] sm:$0xff]
    %v633 = vld [vmem:[%s1 + $0x1f8] sm:$0xff]
    %634 = vmatprep.subr.mxu0 %v571
    %635 = vmatpush1.msra.mxu0 %v570
    %636 = vmatprep.subr.mxu0 %v575
    %637 = vmatpush1.msra.mxu0 %v574
    %638 = vmatprep.subr.mxu0 %v579
    %639 = vmatpush1.msra.mxu0 %v578
    %640 = vmatprep.subr.mxu0 %v583
    %641 = vmatpush1.msra.mxu0 %v582
    %642 = vmatprep.subr.mxu0 %v587
    %643 = vmatpush1.msra.mxu0 %v586
    %644 = vmatprep.subr.mxu0 %v591
    %645 = vmatpush1.msra.mxu0 %v590
    %646 = vmatprep.subr.mxu0 %v595
    %647 = vmatpush1.msra.mxu0 %v594
    %648 = vmatprep.subr.mxu0 %v599
    %649 = vmatpush1.msra.mxu0 %v598
    %650 = vmatprep.subr.mxu0 %v603
    %651 = vmatpush1.msra.mxu0 %v602
    %652 = vmatprep.subr.mxu0 %v607
    %653 = vmatpush1.msra.mxu0 %v606
    %654 = vmatprep.subr.mxu0 %v611
    %655 = vmatpush1.msra.mxu0 %v610
    %656 = vmatprep.subr.mxu0 %v615
    %657 = vmatpush1.msra.mxu0 %v614
    %658 = vmatprep.subr.mxu0 %v619
    %659 = vmatpush1.msra.mxu0 %v618
    %660 = vmatprep.subr.mxu0 %v623
    %661 = vmatpush1.msra.mxu0 %v622
    %662 = vmatprep.subr.mxu0 %v627
    %663 = vmatpush1.msra.mxu0 %v626
    %664 = vmatprep.subr.mxu0 %v631
    %665 = vmatpush1.msra.mxu0 %v630
    %666 = vmatprep.subr.mxu0 0.0
    %667 = vmatpush1.msra.mxu0 0.0
    %668 = vmatprep.subr.mxu0 0.0
    %669 = vmatpush1.msra.mxu0 0.0
    %670 = vmatprep.subr.mxu0 0.0
    %671 = vmatpush1.msra.mxu0 0.0
    %672 = vmatprep.subr.mxu0 0.0
    %673 = vmatpush1.msra.mxu0 0.0
    %674 = vmatprep.subr.mxu0 0.0
    %675 = vmatpush1.msra.mxu0 0.0
    %676 = vmatprep.subr.mxu0 0.0
    %677 = vmatpush1.msra.mxu0 0.0
    %678 = vmatprep.subr.mxu0 0.0
    %679 = vmatpush1.msra.mxu0 0.0
    %680 = vmatprep.subr.mxu0 0.0
    %681 = vmatpush1.msra.mxu0 0.0
    %682 = vmatprep.subr.mxu0 0.0
    %683 = vmatpush1.msra.mxu0 0.0
    %684 = vmatprep.subr.mxu0 0.0
    %685 = vmatpush1.msra.mxu0 0.0
    %686 = vmatprep.subr.mxu0 0.0
    %687 = vmatpush1.msra.mxu0 0.0
    %688 = vmatprep.subr.mxu0 0.0
    %689 = vmatpush1.msra.mxu0 0.0
    %690 = vmatprep.subr.mxu0 0.0
    %691 = vmatpush1.msra.mxu0 0.0
    %692 = vmatprep.subr.mxu0 0.0
    %693 = vmatpush1.msra.mxu0 0.0
    %694 = vmatprep.subr.mxu0 0.0
    %695 = vmatpush1.msra.mxu0 0.0
    %696 = vmatprep.subr.mxu0 0.0
    %697 = vmatpush1.msra.mxu0 0.0
    %698 = vmatprep.mubr.f32.mxu0 0.0
    %699 = vmatmul.mubr.f32.gmra.mrb[0].mxu0 %v505
    %v700 = vpop.f32.mrb[0].mxu0
    %v701 = vadd.f32 0.0, %v700
    %v702 = vpop.f32.mrb[0].mxu0
    %v703 = vadd.f32 0.0, %v702
    %704 = vdwg.mxu0
    %705 = vmatprep.subr.mxu0 %v573
    %706 = vmatpush1.msra.mxu0 %v572
    %707 = vmatprep.subr.mxu0 %v577
    %708 = vmatpush1.msra.mxu0 %v576
    %709 = vmatprep.subr.mxu0 %v581
    %710 = vmatpush1.msra.mxu0 %v580
    %711 = vmatprep.subr.mxu0 %v585
    %712 = vmatpush1.msra.mxu0 %v584
    %713 = vmatprep.subr.mxu0 %v589
    %714 = vmatpush1.msra.mxu0 %v588
    %715 = vmatprep.subr.mxu0 %v593
    %716 = vmatpush1.msra.mxu0 %v592
    %717 = vmatprep.subr.mxu0 %v597
    %718 = vmatpush1.msra.mxu0 %v596
    %719 = vmatprep.subr.mxu0 %v601
    %720 = vmatpush1.msra.mxu0 %v600
    %721 = vmatprep.subr.mxu0 %v605
    %722 = vmatpush1.msra.mxu0 %v604
    %723 = vmatprep.subr.mxu0 %v609
    %724 = vmatpush1.msra.mxu0 %v608
    %725 = vmatprep.subr.mxu0 %v613
    %726 = vmatpush1.msra.mxu0 %v612
    %727 = vmatprep.subr.mxu0 %v617
    %728 = vmatpush1.msra.mxu0 %v616
    %729 = vmatprep.subr.mxu0 %v621
    %730 = vmatpush1.msra.mxu0 %v620
    %731 = vmatprep.subr.mxu0 %v625
    %732 = vmatpush1.msra.mxu0 %v624
    %733 = vmatprep.subr.mxu0 %v629
    %734 = vmatpush1.msra.mxu0 %v628
    %735 = vmatprep.subr.mxu0 %v633
    %736 = vmatpush1.msra.mxu0 %v632
    %737 = vmatprep.subr.mxu0 0.0
    %738 = vmatpush1.msra.mxu0 0.0
    %739 = vmatprep.subr.mxu0 0.0
    %740 = vmatpush1.msra.mxu0 0.0
    %741 = vmatprep.subr.mxu0 0.0
    %742 = vmatpush1.msra.mxu0 0.0
    %743 = vmatprep.subr.mxu0 0.0
    %744 = vmatpush1.msra.mxu0 0.0
    %745 = vmatprep.subr.mxu0 0.0
    %746 = vmatpush1.msra.mxu0 0.0
    %747 = vmatprep.subr.mxu0 0.0
    %748 = vmatpush1.msra.mxu0 0.0
    %749 = vmatprep.subr.mxu0 0.0
    %750 = vmatpush1.msra.mxu0 0.0
    %751 = vmatprep.subr.mxu0 0.0
    %752 = vmatpush1.msra.mxu0 0.0
    %753 = vmatprep.subr.mxu0 0.0
    %754 = vmatpush1.msra.mxu0 0.0
    %755 = vmatprep.subr.mxu0 0.0
    %756 = vmatpush1.msra.mxu0 0.0
    %757 = vmatprep.subr.mxu0 0.0
    %758 = vmatpush1.msra.mxu0 0.0
    %759 = vmatprep.subr.mxu0 0.0
    %760 = vmatpush1.msra.mxu0 0.0
    %761 = vmatprep.subr.mxu0 0.0
    %762 = vmatpush1.msra.mxu0 0.0
    %763 = vmatprep.subr.mxu0 0.0
    %764 = vmatpush1.msra.mxu0 0.0
    %765 = vmatprep.subr.mxu0 0.0
    %766 = vmatpush1.msra.mxu0 0.0
    %767 = vmatprep.subr.mxu0 0.0
    %768 = vmatpush1.msra.mxu0 0.0
    %769 = vmatprep.mubr.f32.mxu0 0.0
    %770 = vmatmul.mubr.f32.gmra.mrb[0].mxu0 %v505
    %v771 = vpop.f32.mrb[0].mxu0
    %v772 = vadd.f32 0.0, %v771
    %v773 = vpop.f32.mrb[0].mxu0
    %v774 = vadd.f32 0.0, %v773
    %775 = vdwg.mxu0
    %776 = vmatprep.subr.mxu0 %v507
    %777 = vmatpush1.msra.mxu0 %v506
    %778 = vmatprep.subr.mxu0 %v511
    %779 = vmatpush1.msra.mxu0 %v510
    %780 = vmatprep.subr.mxu0 %v515
    %781 = vmatpush1.msra.mxu0 %v514
    %782 = vmatprep.subr.mxu0 %v519
    %783 = vmatpush1.msra.mxu0 %v518
    %784 = vmatprep.subr.mxu0 %v523
    %785 = vmatpush1.msra.mxu0 %v522
    %786 = vmatprep.subr.mxu0 %v527
    %787 = vmatpush1.msra.mxu0 %v526
    %788 = vmatprep.subr.mxu0 %v531
    %789 = vmatpush1.msra.mxu0 %v530
    %790 = vmatprep.subr.mxu0 %v535
    %791 = vmatpush1.msra.mxu0 %v534
    %792 = vmatprep.subr.mxu0 %v539
    %793 = vmatpush1.msra.mxu0 %v538
    %794 = vmatprep.subr.mxu0 %v543
    %795 = vmatpush1.msra.mxu0 %v542
    %796 = vmatprep.subr.mxu0 %v547
    %797 = vmatpush1.msra.mxu0 %v546
    %798 = vmatprep.subr.mxu0 %v551
    %799 = vmatpush1.msra.mxu0 %v550
    %800 = vmatprep.subr.mxu0 %v555
    %801 = vmatpush1.msra.mxu0 %v554
    %802 = vmatprep.subr.mxu0 %v559
    %803 = vmatpush1.msra.mxu0 %v558
    %804 = vmatprep.subr.mxu0 %v563
    %805 = vmatpush1.msra.mxu0 %v562
    %806 = vmatprep.subr.mxu0 %v567
    %807 = vmatpush1.msra.mxu0 %v566
    %808 = vmatprep.subr.mxu0 0.0
    %809 = vmatpush1.msra.mxu0 0.0
    %810 = vmatprep.subr.mxu0 0.0
    %811 = vmatpush1.msra.mxu0 0.0
    %812 = vmatprep.subr.mxu0 0.0
    %813 = vmatpush1.msra.mxu0 0.0
    %814 = vmatprep.subr.mxu0 0.0
    %815 = vmatpush1.msra.mxu0 0.0
    %816 = vmatprep.subr.mxu0 0.0
    %817 = vmatpush1.msra.mxu0 0.0
    %818 = vmatprep.subr.mxu0 0.0
    %819 = vmatpush1.msra.mxu0 0.0
    %820 = vmatprep.subr.mxu0 0.0
    %821 = vmatpush1.msra.mxu0 0.0
    %822 = vmatprep.subr.mxu0 0.0
    %823 = vmatpush1.msra.mxu0 0.0
    %824 = vmatprep.subr.mxu0 0.0
    %825 = vmatpush1.msra.mxu0 0.0
    %826 = vmatprep.subr.mxu0 0.0
    %827 = vmatpush1.msra.mxu0 0.0
    %828 = vmatprep.subr.mxu0 0.0
    %829 = vmatpush1.msra.mxu0 0.0
    %830 = vmatprep.subr.mxu0 0.0
    %831 = vmatpush1.msra.mxu0 0.0
    %832 = vmatprep.subr.mxu0 0.0
    %833 = vmatpush1.msra.mxu0 0.0
    %834 = vmatprep.subr.mxu0 0.0
    %835 = vmatpush1.msra.mxu0 0.0
    %836 = vmatprep.subr.mxu0 0.0
    %837 = vmatpush1.msra.mxu0 0.0
    %838 = vmatprep.subr.mxu0 0.0
    %839 = vmatpush1.msra.mxu0 0.0
    %840 = vmatprep.mubr.f32.mxu0 0.0
    %841 = vmatmul.mubr.f32.gmra.mrb[0].mxu0 %v499
    %v842 = vpop.f32.mrb[0].mxu0
    %v843 = vadd.f32 %v701, %v842
    %v844 = vpop.f32.mrb[0].mxu0
    %v845 = vadd.f32 %v703, %v844
    %846 = vdwg.mxu0
    %847 = vmatprep.subr.mxu0 %v509
    %848 = vmatpush1.msra.mxu0 %v508
    %849 = vmatprep.subr.mxu0 %v513
    %850 = vmatpush1.msra.mxu0 %v512
    %851 = vmatprep.subr.mxu0 %v517
    %852 = vmatpush1.msra.mxu0 %v516
    %853 = vmatprep.subr.mxu0 %v521
    %854 = vmatpush1.msra.mxu0 %v520
    %855 = vmatprep.subr.mxu0 %v525
    %856 = vmatpush1.msra.mxu0 %v524
    %857 = vmatprep.subr.mxu0 %v529
    %858 = vmatpush1.msra.mxu0 %v528
    %859 = vmatprep.subr.mxu0 %v533
    %860 = vmatpush1.msra.mxu0 %v532
    %861 = vmatprep.subr.mxu0 %v537
    %862 = vmatpush1.msra.mxu0 %v536
    %863 = vmatprep.subr.mxu0 %v541
    %864 = vmatpush1.msra.mxu0 %v540
    %865 = vmatprep.subr.mxu0 %v545
    %866 = vmatpush1.msra.mxu0 %v544
    %867 = vmatprep.subr.mxu0 %v549
    %868 = vmatpush1.msra.mxu0 %v548
    %869 = vmatprep.subr.mxu0 %v553
    %870 = vmatpush1.msra.mxu0 %v552
    %871 = vmatprep.subr.mxu0 %v557
    %872 = vmatpush1.msra.mxu0 %v556
    %873 = vmatprep.subr.mxu0 %v561
    %874 = vmatpush1.msra.mxu0 %v560
    %875 = vmatprep.subr.mxu0 %v565
    %876 = vmatpush1.msra.mxu0 %v564
    %877 = vmatprep.subr.mxu0 %v569
    %878 = vmatpush1.msra.mxu0 %v568
    %879 = vmatprep.subr.mxu0 0.0
    %880 = vmatpush1.msra.mxu0 0.0
    %881 = vmatprep.subr.mxu0 0.0
    %882 = vmatpush1.msra.mxu0 0.0
    %883 = vmatprep.subr.mxu0 0.0
    %884 = vmatpush1.msra.mxu0 0.0
    %885 = vmatprep.subr.mxu0 0.0
    %886 = vmatpush1.msra.mxu0 0.0
    %887 = vmatprep.subr.mxu0 0.0
    %888 = vmatpush1.msra.mxu0 0.0
    %889 = vmatprep.subr.mxu0 0.0
    %890 = vmatpush1.msra.mxu0 0.0
    %891 = vmatprep.subr.mxu0 0.0
    %892 = vmatpush1.msra.mxu0 0.0
    %893 = vmatprep.subr.mxu0 0.0
    %894 = vmatpush1.msra.mxu0 0.0
    %895 = vmatprep.subr.mxu0 0.0
    %896 = vmatpush1.msra.mxu0 0.0
    %897 = vmatprep.subr.mxu0 0.0
    %898 = vmatpush1.msra.mxu0 0.0
    %899 = vmatprep.subr.mxu0 0.0
    %900 = vmatpush1.msra.mxu0 0.0
    %901 = vmatprep.subr.mxu0 0.0
    %902 = vmatpush1.msra.mxu0 0.0
    %903 = vmatprep.subr.mxu0 0.0
    %904 = vmatpush1.msra.mxu0 0.0
    %905 = vmatprep.subr.mxu0 0.0
    %906 = vmatpush1.msra.mxu0 0.0
    %907 = vmatprep.subr.mxu0 0.0
    %908 = vmatpush1.msra.mxu0 0.0
    %909 = vmatprep.subr.mxu0 0.0
    %910 = vmatpush1.msra.mxu0 0.0
    %911 = vmatprep.mubr.f32.mxu0 0.0
    %912 = vmatmul.mubr.f32.gmra.mrb[0].mxu0 %v499
    %v913 = vpop.f32.mrb[0].mxu0
    %v914 = vadd.f32 %v772, %v913
    %v915 = vpop.f32.mrb[0].mxu0
    %v916 = vadd.f32 %v774, %v915
    %917 = vdwg.mxu0
    %v918 = vadd.f32 %v843, %v31
    %v919 = vadd.f32 %v845, %v35
    %v920 = vadd.f32 %v914, %v39
    %v921 = vadd.f32 %v916, %v43
    %v922 = vxor.u32 %v918, 2147483648
    %v923 = vmul.f32 %v922, 1.442695
    %v924 = vpow.pop %v923
    %v925 = vadd.f32 %v924, 1.0
    %v926 = vrcp.pop %v925
    %v927 = vmul.f32 1.0, %v926
    %v928 = vxor.u32 %v919, 2147483648
    %v929 = vmul.f32 %v928, 1.442695
    %v930 = vpow.pop %v929
    %v931 = vadd.f32 %v930, 1.0
    %v932 = vrcp.pop %v931
    %v933 = vmul.f32 1.0, %v932
    %v934 = vtanh.pop %v920
    %v935 = vxor.u32 %v921, 2147483648
    %v936 = vmul.f32 %v935, 1.442695
    %v937 = vpow.pop %v936
    %v938 = vadd.f32 %v937, 1.0
    %v939 = vrcp.pop %v938
    %v940 = vmul.f32 1.0, %v939
    %v941 = vmul.f32 %v933, %v497
    %v942 = vmul.f32 %v927, %v934
    %v943 = vadd.f32 %v941, %v942
    %v944 = vtanh.pop %v943
    %v945 = vmul.f32 %v940, %v944
    %s946 = scalar_lea.vmem [#allocation2], %s503
    %947 = vst [vmem:[%s946] sm:$0xff] %v945
    %s948 = sadd.s32 %s56, 2
    %s949 = smul.u32 %s948, 8
    %s950 = scalar_lea.vmem %s0, %s949
    %v951 = vld [vmem:[%s950] sm:$0xff]
    %v952 = vld [vmem:[%s2] sm:$0xff]
    %v953 = vld [vmem:[%s2 + $0x8] sm:$0xff]
    %v954 = vld [vmem:[%s2 + $0x10] sm:$0xff]
    %v955 = vld [vmem:[%s2 + $0x18] sm:$0xff]
    %v956 = vld [vmem:[%s2 + $0x20] sm:$0xff]
    %v957 = vld [vmem:[%s2 + $0x28] sm:$0xff]
    %v958 = vld [vmem:[%s2 + $0x30] sm:$0xff]
    %v959 = vld [vmem:[%s2 + $0x38] sm:$0xff]
    %v960 = vld [vmem:[%s2 + $0x40] sm:$0xff]
    %v961 = vld [vmem:[%s2 + $0x48] sm:$0xff]
    %v962 = vld [vmem:[%s2 + $0x50] sm:$0xff]
    %v963 = vld [vmem:[%s2 + $0x58] sm:$0xff]
    %v964 = vld [vmem:[%s2 + $0x60] sm:$0xff]
    %v965 = vld [vmem:[%s2 + $0x68] sm:$0xff]
    %v966 = vld [vmem:[%s2 + $0x70] sm:$0xff]
    %v967 = vld [vmem:[%s2 + $0x78] sm:$0xff]
    %v968 = vld [vmem:[%s2 + $0x80] sm:$0xff]
    %v969 = vld [vmem:[%s2 + $0x88] sm:$0xff]
    %v970 = vld [vmem:[%s2 + $0x90] sm:$0xff]
    %v971 = vld [vmem:[%s2 + $0x98] sm:$0xff]
    %v972 = vld [vmem:[%s2 + $0xa0] sm:$0xff]
    %v973 = vld [vmem:[%s2 + $0xa8] sm:$0xff]
    %v974 = vld [vmem:[%s2 + $0xb0] sm:$0xff]
    %v975 = vld [vmem:[%s2 + $0xb8] sm:$0xff]
    %v976 = vld [vmem:[%s2 + $0xc0] sm:$0xff]
    %v977 = vld [vmem:[%s2 + $0xc8] sm:$0xff]
    %v978 = vld [vmem:[%s2 + $0xd0] sm:$0xff]
    %v979 = vld [vmem:[%s2 + $0xd8] sm:$0xff]
    %v980 = vld [vmem:[%s2 + $0xe0] sm:$0xff]
    %v981 = vld [vmem:[%s2 + $0xe8] sm:$0xff]
    %v982 = vld [vmem:[%s2 + $0xf0] sm:$0xff]
    %v983 = vld [vmem:[%s2 + $0xf8] sm:$0xff]
    %v984 = vld [vmem:[%s2 + $0x100] sm:$0xff]
    %v985 = vld [vmem:[%s2 + $0x108] sm:$0xff]
    %v986 = vld [vmem:[%s2 + $0x110] sm:$0xff]
    %v987 = vld [vmem:[%s2 + $0x118] sm:$0xff]
    %v988 = vld [vmem:[%s2 + $0x120] sm:$0xff]
    %v989 = vld [vmem:[%s2 + $0x128] sm:$0xff]
    %v990 = vld [vmem:[%s2 + $0x130] sm:$0xff]
    %v991 = vld [vmem:[%s2 + $0x138] sm:$0xff]
    %v992 = vld [vmem:[%s2 + $0x140] sm:$0xff]
    %v993 = vld [vmem:[%s2 + $0x148] sm:$0xff]
    %v994 = vld [vmem:[%s2 + $0x150] sm:$0xff]
    %v995 = vld [vmem:[%s2 + $0x158] sm:$0xff]
    %v996 = vld [vmem:[%s2 + $0x160] sm:$0xff]
    %v997 = vld [vmem:[%s2 + $0x168] sm:$0xff]
    %v998 = vld [vmem:[%s2 + $0x170] sm:$0xff]
    %v999 = vld [vmem:[%s2 + $0x178] sm:$0xff]
    %v1000 = vld [vmem:[%s2 + $0x180] sm:$0xff]
    %v1001 = vld [vmem:[%s2 + $0x188] sm:$0xff]
    %v1002 = vld [vmem:[%s2 + $0x190] sm:$0xff]
    %v1003 = vld [vmem:[%s2 + $0x198] sm:$0xff]
    %v1004 = vld [vmem:[%s2 + $0x1a0] sm:$0xff]
    %v1005 = vld [vmem:[%s2 + $0x1a8] sm:$0xff]
    %v1006 = vld [vmem:[%s2 + $0x1b0] sm:$0xff]
    %v1007 = vld [vmem:[%s2 + $0x1b8] sm:$0xff]
    %v1008 = vld [vmem:[%s2 + $0x1c0] sm:$0xff]
    %v1009 = vld [vmem:[%s2 + $0x1c8] sm:$0xff]
    %v1010 = vld [vmem:[%s2 + $0x1d0] sm:$0xff]
    %v1011 = vld [vmem:[%s2 + $0x1d8] sm:$0xff]
    %v1012 = vld [vmem:[%s2 + $0x1e0] sm:$0xff]
    %v1013 = vld [vmem:[%s2 + $0x1e8] sm:$0xff]
    %v1014 = vld [vmem:[%s2 + $0x1f0] sm:$0xff]
    %v1015 = vld [vmem:[%s2 + $0x1f8] sm:$0xff]
    %v1016 = vld [vmem:[%s1] sm:$0xff]
    %v1017 = vld [vmem:[%s1 + $0x8] sm:$0xff]
    %v1018 = vld [vmem:[%s1 + $0x10] sm:$0xff]
    %v1019 = vld [vmem:[%s1 + $0x18] sm:$0xff]
    %v1020 = vld [vmem:[%s1 + $0x20] sm:$0xff]
    %v1021 = vld [vmem:[%s1 + $0x28] sm:$0xff]
    %v1022 = vld [vmem:[%s1 + $0x30] sm:$0xff]
    %v1023 = vld [vmem:[%s1 + $0x38] sm:$0xff]
    %v1024 = vld [vmem:[%s1 + $0x40] sm:$0xff]
    %v1025 = vld [vmem:[%s1 + $0x48] sm:$0xff]
    %v1026 = vld [vmem:[%s1 + $0x50] sm:$0xff]
    %v1027 = vld [vmem:[%s1 + $0x58] sm:$0xff]
    %v1028 = vld [vmem:[%s1 + $0x60] sm:$0xff]
    %v1029 = vld [vmem:[%s1 + $0x68] sm:$0xff]
    %v1030 = vld [vmem:[%s1 + $0x70] sm:$0xff]
    %v1031 = vld [vmem:[%s1 + $0x78] sm:$0xff]
    %v1032 = vld [vmem:[%s1 + $0x80] sm:$0xff]
    %v1033 = vld [vmem:[%s1 + $0x88] sm:$0xff]
    %v1034 = vld [vmem:[%s1 + $0x90] sm:$0xff]
    %v1035 = vld [vmem:[%s1 + $0x98] sm:$0xff]
    %v1036 = vld [vmem:[%s1 + $0xa0] sm:$0xff]
    %v1037 = vld [vmem:[%s1 + $0xa8] sm:$0xff]
    %v1038 = vld [vmem:[%s1 + $0xb0] sm:$0xff]
    %v1039 = vld [vmem:[%s1 + $0xb8] sm:$0xff]
    %v1040 = vld [vmem:[%s1 + $0xc0] sm:$0xff]
    %v1041 = vld [vmem:[%s1 + $0xc8] sm:$0xff]
    %v1042 = vld [vmem:[%s1 + $0xd0] sm:$0xff]
    %v1043 = vld [vmem:[%s1 + $0xd8] sm:$0xff]
    %v1044 = vld [vmem:[%s1 + $0xe0] sm:$0xff]
    %v1045 = vld [vmem:[%s1 + $0xe8] sm:$0xff]
    %v1046 = vld [vmem:[%s1 + $0xf0] sm:$0xff]
    %v1047 = vld [vmem:[%s1 + $0xf8] sm:$0xff]
    %v1048 = vld [vmem:[%s1 + $0x100] sm:$0xff]
    %v1049 = vld [vmem:[%s1 + $0x108] sm:$0xff]
    %v1050 = vld [vmem:[%s1 + $0x110] sm:$0xff]
    %v1051 = vld [vmem:[%s1 + $0x118] sm:$0xff]
    %v1052 = vld [vmem:[%s1 + $0x120] sm:$0xff]
    %v1053 = vld [vmem:[%s1 + $0x128] sm:$0xff]
    %v1054 = vld [vmem:[%s1 + $0x130] sm:$0xff]
    %v1055 = vld [vmem:[%s1 + $0x138] sm:$0xff]
    %v1056 = vld [vmem:[%s1 + $0x140] sm:$0xff]
    %v1057 = vld [vmem:[%s1 + $0x148] sm:$0xff]
    %v1058 = vld [vmem:[%s1 + $0x150] sm:$0xff]
    %v1059 = vld [vmem:[%s1 + $0x158] sm:$0xff]
    %v1060 = vld [vmem:[%s1 + $0x160] sm:$0xff]
    %v1061 = vld [vmem:[%s1 + $0x168] sm:$0xff]
    %v1062 = vld [vmem:[%s1 + $0x170] sm:$0xff]
    %v1063 = vld [vmem:[%s1 + $0x178] sm:$0xff]
    %v1064 = vld [vmem:[%s1 + $0x180] sm:$0xff]
    %v1065 = vld [vmem:[%s1 + $0x188] sm:$0xff]
    %v1066 = vld [vmem:[%s1 + $0x190] sm:$0xff]
    %v1067 = vld [vmem:[%s1 + $0x198] sm:$0xff]
    %v1068 = vld [vmem:[%s1 + $0x1a0] sm:$0xff]
    %v1069 = vld [vmem:[%s1 + $0x1a8] sm:$0xff]
    %v1070 = vld [vmem:[%s1 + $0x1b0] sm:$0xff]
    %v1071 = vld [vmem:[%s1 + $0x1b8] sm:$0xff]
    %v1072 = vld [vmem:[%s1 + $0x1c0] sm:$0xff]
    %v1073 = vld [vmem:[%s1 + $0x1c8] sm:$0xff]
    %v1074 = vld [vmem:[%s1 + $0x1d0] sm:$0xff]
    %v1075 = vld [vmem:[%s1 + $0x1d8] sm:$0xff]
    %v1076 = vld [vmem:[%s1 + $0x1e0] sm:$0xff]
    %v1077 = vld [vmem:[%s1 + $0x1e8] sm:$0xff]
    %v1078 = vld [vmem:[%s1 + $0x1f0] sm:$0xff]
    %v1079 = vld [vmem:[%s1 + $0x1f8] sm:$0xff]
    %1080 = vmatprep.subr.mxu0 %v1017
    %1081 = vmatpush1.msra.mxu0 %v1016
    %1082 = vmatprep.subr.mxu0 %v1021
    %1083 = vmatpush1.msra.mxu0 %v1020
    %1084 = vmatprep.subr.mxu0 %v1025
    %1085 = vmatpush1.msra.mxu0 %v1024
    %1086 = vmatprep.subr.mxu0 %v1029
    %1087 = vmatpush1.msra.mxu0 %v1028
    %1088 = vmatprep.subr.mxu0 %v1033
    %1089 = vmatpush1.msra.mxu0 %v1032
    %1090 = vmatprep.subr.mxu0 %v1037
    %1091 = vmatpush1.msra.mxu0 %v1036
    %1092 = vmatprep.subr.mxu0 %v1041
    %1093 = vmatpush1.msra.mxu0 %v1040
    %1094 = vmatprep.subr.mxu0 %v1045
    %1095 = vmatpush1.msra.mxu0 %v1044
    %1096 = vmatprep.subr.mxu0 %v1049
    %1097 = vmatpush1.msra.mxu0 %v1048
    %1098 = vmatprep.subr.mxu0 %v1053
    %1099 = vmatpush1.msra.mxu0 %v1052
    %1100 = vmatprep.subr.mxu0 %v1057
    %1101 = vmatpush1.msra.mxu0 %v1056
    %1102 = vmatprep.subr.mxu0 %v1061
    %1103 = vmatpush1.msra.mxu0 %v1060
    %1104 = vmatprep.subr.mxu0 %v1065
    %1105 = vmatpush1.msra.mxu0 %v1064
    %1106 = vmatprep.subr.mxu0 %v1069
    %1107 = vmatpush1.msra.mxu0 %v1068
    %1108 = vmatprep.subr.mxu0 %v1073
    %1109 = vmatpush1.msra.mxu0 %v1072
    %1110 = vmatprep.subr.mxu0 %v1077
    %1111 = vmatpush1.msra.mxu0 %v1076
    %1112 = vmatprep.subr.mxu0 0.0
    %1113 = vmatpush1.msra.mxu0 0.0
    %1114 = vmatprep.subr.mxu0 0.0
    %1115 = vmatpush1.msra.mxu0 0.0
    %1116 = vmatprep.subr.mxu0 0.0
    %1117 = vmatpush1.msra.mxu0 0.0
    %1118 = vmatprep.subr.mxu0 0.0
    %1119 = vmatpush1.msra.mxu0 0.0
    %1120 = vmatprep.subr.mxu0 0.0
    %1121 = vmatpush1.msra.mxu0 0.0
    %1122 = vmatprep.subr.mxu0 0.0
    %1123 = vmatpush1.msra.mxu0 0.0
    %1124 = vmatprep.subr.mxu0 0.0
    %1125 = vmatpush1.msra.mxu0 0.0
    %1126 = vmatprep.subr.mxu0 0.0
    %1127 = vmatpush1.msra.mxu0 0.0
    %1128 = vmatprep.subr.mxu0 0.0
    %1129 = vmatpush1.msra.mxu0 0.0
    %1130 = vmatprep.subr.mxu0 0.0
    %1131 = vmatpush1.msra.mxu0 0.0
    %1132 = vmatprep.subr.mxu0 0.0
    %1133 = vmatpush1.msra.mxu0 0.0
    %1134 = vmatprep.subr.mxu0 0.0
    %1135 = vmatpush1.msra.mxu0 0.0
    %1136 = vmatprep.subr.mxu0 0.0
    %1137 = vmatpush1.msra.mxu0 0.0
    %1138 = vmatprep.subr.mxu0 0.0
    %1139 = vmatpush1.msra.mxu0 0.0
    %1140 = vmatprep.subr.mxu0 0.0
    %1141 = vmatpush1.msra.mxu0 0.0
    %1142 = vmatprep.subr.mxu0 0.0
    %1143 = vmatpush1.msra.mxu0 0.0
    %1144 = vmatprep.mubr.f32.mxu0 0.0
    %1145 = vmatmul.mubr.f32.gmra.mrb[0].mxu0 %v951
    %v1146 = vpop.f32.mrb[0].mxu0
    %v1147 = vadd.f32 0.0, %v1146
    %v1148 = vpop.f32.mrb[0].mxu0
    %v1149 = vadd.f32 0.0, %v1148
    %1150 = vdwg.mxu0
    %1151 = vmatprep.subr.mxu0 %v1019
    %1152 = vmatpush1.msra.mxu0 %v1018
    %1153 = vmatprep.subr.mxu0 %v1023
    %1154 = vmatpush1.msra.mxu0 %v1022
    %1155 = vmatprep.subr.mxu0 %v1027
    %1156 = vmatpush1.msra.mxu0 %v1026
    %1157 = vmatprep.subr.mxu0 %v1031
    %1158 = vmatpush1.msra.mxu0 %v1030
    %1159 = vmatprep.subr.mxu0 %v1035
    %1160 = vmatpush1.msra.mxu0 %v1034
    %1161 = vmatprep.subr.mxu0 %v1039
    %1162 = vmatpush1.msra.mxu0 %v1038
    %1163 = vmatprep.subr.mxu0 %v1043
    %1164 = vmatpush1.msra.mxu0 %v1042
    %1165 = vmatprep.subr.mxu0 %v1047
    %1166 = vmatpush1.msra.mxu0 %v1046
    %1167 = vmatprep.subr.mxu0 %v1051
    %1168 = vmatpush1.msra.mxu0 %v1050
    %1169 = vmatprep.subr.mxu0 %v1055
    %1170 = vmatpush1.msra.mxu0 %v1054
    %1171 = vmatprep.subr.mxu0 %v1059
    %1172 = vmatpush1.msra.mxu0 %v1058
    %1173 = vmatprep.subr.mxu0 %v1063
    %1174 = vmatpush1.msra.mxu0 %v1062
    %1175 = vmatprep.subr.mxu0 %v1067
    %1176 = vmatpush1.msra.mxu0 %v1066
    %1177 = vmatprep.subr.mxu0 %v1071
    %1178 = vmatpush1.msra.mxu0 %v1070
    %1179 = vmatprep.subr.mxu0 %v1075
    %1180 = vmatpush1.msra.mxu0 %v1074
    %1181 = vmatprep.subr.mxu0 %v1079
    %1182 = vmatpush1.msra.mxu0 %v1078
    %1183 = vmatprep.subr.mxu0 0.0
    %1184 = vmatpush1.msra.mxu0 0.0
    %1185 = vmatprep.subr.mxu0 0.0
    %1186 = vmatpush1.msra.mxu0 0.0
    %1187 = vmatprep.subr.mxu0 0.0
    %1188 = vmatpush1.msra.mxu0 0.0
    %1189 = vmatprep.subr.mxu0 0.0
    %1190 = vmatpush1.msra.mxu0 0.0
    %1191 = vmatprep.subr.mxu0 0.0
    %1192 = vmatpush1.msra.mxu0 0.0
    %1193 = vmatprep.subr.mxu0 0.0
    %1194 = vmatpush1.msra.mxu0 0.0
    %1195 = vmatprep.subr.mxu0 0.0
    %1196 = vmatpush1.msra.mxu0 0.0
    %1197 = vmatprep.subr.mxu0 0.0
    %1198 = vmatpush1.msra.mxu0 0.0
    %1199 = vmatprep.subr.mxu0 0.0
    %1200 = vmatpush1.msra.mxu0 0.0
    %1201 = vmatprep.subr.mxu0 0.0
    %1202 = vmatpush1.msra.mxu0 0.0
    %1203 = vmatprep.subr.mxu0 0.0
    %1204 = vmatpush1.msra.mxu0 0.0
    %1205 = vmatprep.subr.mxu0 0.0
    %1206 = vmatpush1.msra.mxu0 0.0
    %1207 = vmatprep.subr.mxu0 0.0
    %1208 = vmatpush1.msra.mxu0 0.0
    %1209 = vmatprep.subr.mxu0 0.0
    %1210 = vmatpush1.msra.mxu0 0.0
    %1211 = vmatprep.subr.mxu0 0.0
    %1212 = vmatpush1.msra.mxu0 0.0
    %1213 = vmatprep.subr.mxu0 0.0
    %1214 = vmatpush1.msra.mxu0 0.0
    %1215 = vmatprep.mubr.f32.mxu0 0.0
    %1216 = vmatmul.mubr.f32.gmra.mrb[0].mxu0 %v951
    %v1217 = vpop.f32.mrb[0].mxu0
    %v1218 = vadd.f32 0.0, %v1217
    %v1219 = vpop.f32.mrb[0].mxu0
    %v1220 = vadd.f32 0.0, %v1219
    %1221 = vdwg.mxu0
    %1222 = vmatprep.subr.mxu0 %v953
    %1223 = vmatpush1.msra.mxu0 %v952
    %1224 = vmatprep.subr.mxu0 %v957
    %1225 = vmatpush1.msra.mxu0 %v956
    %1226 = vmatprep.subr.mxu0 %v961
    %1227 = vmatpush1.msra.mxu0 %v960
    %1228 = vmatprep.subr.mxu0 %v965
    %1229 = vmatpush1.msra.mxu0 %v964
    %1230 = vmatprep.subr.mxu0 %v969
    %1231 = vmatpush1.msra.mxu0 %v968
    %1232 = vmatprep.subr.mxu0 %v973
    %1233 = vmatpush1.msra.mxu0 %v972
    %1234 = vmatprep.subr.mxu0 %v977
    %1235 = vmatpush1.msra.mxu0 %v976
    %1236 = vmatprep.subr.mxu0 %v981
    %1237 = vmatpush1.msra.mxu0 %v980
    %1238 = vmatprep.subr.mxu0 %v985
    %1239 = vmatpush1.msra.mxu0 %v984
    %1240 = vmatprep.subr.mxu0 %v989
    %1241 = vmatpush1.msra.mxu0 %v988
    %1242 = vmatprep.subr.mxu0 %v993
    %1243 = vmatpush1.msra.mxu0 %v992
    %1244 = vmatprep.subr.mxu0 %v997
    %1245 = vmatpush1.msra.mxu0 %v996
    %1246 = vmatprep.subr.mxu0 %v1001
    %1247 = vmatpush1.msra.mxu0 %v1000
    %1248 = vmatprep.subr.mxu0 %v1005
    %1249 = vmatpush1.msra.mxu0 %v1004
    %1250 = vmatprep.subr.mxu0 %v1009
    %1251 = vmatpush1.msra.mxu0 %v1008
    %1252 = vmatprep.subr.mxu0 %v1013
    %1253 = vmatpush1.msra.mxu0 %v1012
    %1254 = vmatprep.subr.mxu0 0.0
    %1255 = vmatpush1.msra.mxu0 0.0
    %1256 = vmatprep.subr.mxu0 0.0
    %1257 = vmatpush1.msra.mxu0 0.0
    %1258 = vmatprep.subr.mxu0 0.0
    %1259 = vmatpush1.msra.mxu0 0.0
    %1260 = vmatprep.subr.mxu0 0.0
    %1261 = vmatpush1.msra.mxu0 0.0
    %1262 = vmatprep.subr.mxu0 0.0
    %1263 = vmatpush1.msra.mxu0 0.0
    %1264 = vmatprep.subr.mxu0 0.0
    %1265 = vmatpush1.msra.mxu0 0.0
    %1266 = vmatprep.subr.mxu0 0.0
    %1267 = vmatpush1.msra.mxu0 0.0
    %1268 = vmatprep.subr.mxu0 0.0
    %1269 = vmatpush1.msra.mxu0 0.0
    %1270 = vmatprep.subr.mxu0 0.0
    %1271 = vmatpush1.msra.mxu0 0.0
    %1272 = vmatprep.subr.mxu0 0.0
    %1273 = vmatpush1.msra.mxu0 0.0
    %1274 = vmatprep.subr.mxu0 0.0
    %1275 = vmatpush1.msra.mxu0 0.0
    %1276 = vmatprep.subr.mxu0 0.0
    %1277 = vmatpush1.msra.mxu0 0.0
    %1278 = vmatprep.subr.mxu0 0.0
    %1279 = vmatpush1.msra.mxu0 0.0
    %1280 = vmatprep.subr.mxu0 0.0
    %1281 = vmatpush1.msra.mxu0 0.0
    %1282 = vmatprep.subr.mxu0 0.0
    %1283 = vmatpush1.msra.mxu0 0.0
    %1284 = vmatprep.subr.mxu0 0.0
    %1285 = vmatpush1.msra.mxu0 0.0
    %1286 = vmatprep.mubr.f32.mxu0 0.0
    %1287 = vmatmul.mubr.f32.gmra.mrb[0].mxu0 %v945
    %v1288 = vpop.f32.mrb[0].mxu0
    %v1289 = vadd.f32 %v1147, %v1288
    %v1290 = vpop.f32.mrb[0].mxu0
    %v1291 = vadd.f32 %v1149, %v1290
    %1292 = vdwg.mxu0
    %1293 = vmatprep.subr.mxu0 %v955
    %1294 = vmatpush1.msra.mxu0 %v954
    %1295 = vmatprep.subr.mxu0 %v959
    %1296 = vmatpush1.msra.mxu0 %v958
    %1297 = vmatprep.subr.mxu0 %v963
    %1298 = vmatpush1.msra.mxu0 %v962
    %1299 = vmatprep.subr.mxu0 %v967
    %1300 = vmatpush1.msra.mxu0 %v966
    %1301 = vmatprep.subr.mxu0 %v971
    %1302 = vmatpush1.msra.mxu0 %v970
    %1303 = vmatprep.subr.mxu0 %v975
    %1304 = vmatpush1.msra.mxu0 %v974
    %1305 = vmatprep.subr.mxu0 %v979
    %1306 = vmatpush1.msra.mxu0 %v978
    %1307 = vmatprep.subr.mxu0 %v983
    %1308 = vmatpush1.msra.mxu0 %v982
    %1309 = vmatprep.subr.mxu0 %v987
    %1310 = vmatpush1.msra.mxu0 %v986
    %1311 = vmatprep.subr.mxu0 %v991
    %1312 = vmatpush1.msra.mxu0 %v990
    %1313 = vmatprep.subr.mxu0 %v995
    %1314 = vmatpush1.msra.mxu0 %v994
    %1315 = vmatprep.subr.mxu0 %v999
    %1316 = vmatpush1.msra.mxu0 %v998
    %1317 = vmatprep.subr.mxu0 %v1003
    %1318 = vmatpush1.msra.mxu0 %v1002
    %1319 = vmatprep.subr.mxu0 %v1007
    %1320 = vmatpush1.msra.mxu0 %v1006
    %1321 = vmatprep.subr.mxu0 %v1011
    %1322 = vmatpush1.msra.mxu0 %v1010
    %1323 = vmatprep.subr.mxu0 %v1015
    %1324 = vmatpush1.msra.mxu0 %v1014
    %1325 = vmatprep.subr.mxu0 0.0
    %1326 = vmatpush1.msra.mxu0 0.0
    %1327 = vmatprep.subr.mxu0 0.0
    %1328 = vmatpush1.msra.mxu0 0.0
    %1329 = vmatprep.subr.mxu0 0.0
    %1330 = vmatpush1.msra.mxu0 0.0
    %1331 = vmatprep.subr.mxu0 0.0
    %1332 = vmatpush1.msra.mxu0 0.0
    %1333 = vmatprep.subr.mxu0 0.0
    %1334 = vmatpush1.msra.mxu0 0.0
    %1335 = vmatprep.subr.mxu0 0.0
    %1336 = vmatpush1.msra.mxu0 0.0
    %1337 = vmatprep.subr.mxu0 0.0
    %1338 = vmatpush1.msra.mxu0 0.0
    %1339 = vmatprep.subr.mxu0 0.0
    %1340 = vmatpush1.msra.mxu0 0.0
    %1341 = vmatprep.subr.mxu0 0.0
    %1342 = vmatpush1.msra.mxu0 0.0
    %1343 = vmatprep.subr.mxu0 0.0
    %1344 = vmatpush1.msra.mxu0 0.0
    %1345 = vmatprep.subr.mxu0 0.0
    %1346 = vmatpush1.msra.mxu0 0.0
    %1347 = vmatprep.subr.mxu0 0.0
    %1348 = vmatpush1.msra.mxu0 0.0
    %1349 = vmatprep.subr.mxu0 0.0
    %1350 = vmatpush1.msra.mxu0 0.0
    %1351 = vmatprep.subr.mxu0 0.0
    %1352 = vmatpush1.msra.mxu0 0.0
    %1353 = vmatprep.subr.mxu0 0.0
    %1354 = vmatpush1.msra.mxu0 0.0
    %1355 = vmatprep.subr.mxu0 0.0
    %1356 = vmatpush1.msra.mxu0 0.0
    %1357 = vmatprep.mubr.f32.mxu0 0.0
    %1358 = vmatmul.mubr.f32.gmra.mrb[0].mxu0 %v945
    %v1359 = vpop.f32.mrb[0].mxu0
    %v1360 = vadd.f32 %v1218, %v1359
    %v1361 = vpop.f32.mrb[0].mxu0
    %v1362 = vadd.f32 %v1220, %v1361
    %1363 = vdwg.mxu0
    %v1364 = vadd.f32 %v1289, %v31
    %v1365 = vadd.f32 %v1291, %v35
    %v1366 = vadd.f32 %v1360, %v39
    %v1367 = vadd.f32 %v1362, %v43
    %v1368 = vxor.u32 %v1364, 2147483648
    %v1369 = vmul.f32 %v1368, 1.442695
    %v1370 = vpow.pop %v1369
    %v1371 = vadd.f32 %v1370, 1.0
    %v1372 = vrcp.pop %v1371
    %v1373 = vmul.f32 1.0, %v1372
    %v1374 = vxor.u32 %v1365, 2147483648
    %v1375 = vmul.f32 %v1374, 1.442695
    %v1376 = vpow.pop %v1375
    %v1377 = vadd.f32 %v1376, 1.0
    %v1378 = vrcp.pop %v1377
    %v1379 = vmul.f32 1.0, %v1378
    %v1380 = vtanh.pop %v1366
    %v1381 = vxor.u32 %v1367, 2147483648
    %v1382 = vmul.f32 %v1381, 1.442695
    %v1383 = vpow.pop %v1382
    %v1384 = vadd.f32 %v1383, 1.0
    %v1385 = vrcp.pop %v1384
    %v1386 = vmul.f32 1.0, %v1385
    %v1387 = vmul.f32 %v1379, %v943
    %v1388 = vmul.f32 %v1373, %v1380
    %v1389 = vadd.f32 %v1387, %v1388
    %v1390 = vtanh.pop %v1389
    %v1391 = vmul.f32 %v1386, %v1390
    %s1392 = scalar_lea.vmem [#allocation2], %s949
    %1393 = vst [vmem:[%s1392] sm:$0xff] %v1391
    %s1394 = sadd.s32 %s56, 3
    %s1395 = smul.u32 %s1394, 8
    %s1396 = scalar_lea.vmem %s0, %s1395
    %v1397 = vld [vmem:[%s1396] sm:$0xff]
    %v1398 = vld [vmem:[%s2] sm:$0xff]
    %v1399 = vld [vmem:[%s2 + $0x8] sm:$0xff]
    %v1400 = vld [vmem:[%s2 + $0x10] sm:$0xff]
    %v1401 = vld [vmem:[%s2 + $0x18] sm:$0xff]
    %v1402 = vld [vmem:[%s2 + $0x20] sm:$0xff]
    %v1403 = vld [vmem:[%s2 + $0x28] sm:$0xff]
    %v1404 = vld [vmem:[%s2 + $0x30] sm:$0xff]
    %v1405 = vld [vmem:[%s2 + $0x38] sm:$0xff]
    %v1406 = vld [vmem:[%s2 + $0x40] sm:$0xff]
    %v1407 = vld [vmem:[%s2 + $0x48] sm:$0xff]
    %v1408 = vld [vmem:[%s2 + $0x50] sm:$0xff]
    %v1409 = vld [vmem:[%s2 + $0x58] sm:$0xff]
    %v1410 = vld [vmem:[%s2 + $0x60] sm:$0xff]
    %v1411 = vld [vmem:[%s2 + $0x68] sm:$0xff]
    %v1412 = vld [vmem:[%s2 + $0x70] sm:$0xff]
    %v1413 = vld [vmem:[%s2 + $0x78] sm:$0xff]
    %v1414 = vld [vmem:[%s2 + $0x80] sm:$0xff]
    %v1415 = vld [vmem:[%s2 + $0x88] sm:$0xff]
    %v1416 = vld [vmem:[%s2 + $0x90] sm:$0xff]
    %v1417 = vld [vmem:[%s2 + $0x98] sm:$0xff]
    %v1418 = vld [vmem:[%s2 + $0xa0] sm:$0xff]
    %v1419 = vld [vmem:[%s2 + $0xa8] sm:$0xff]
    %v1420 = vld [vmem:[%s2 + $0xb0] sm:$0xff]
    %v1421 = vld [vmem:[%s2 + $0xb8] sm:$0xff]
    %v1422 = vld [vmem:[%s2 + $0xc0] sm:$0xff]
    %v1423 = vld [vmem:[%s2 + $0xc8] sm:$0xff]
    %v1424 = vld [vmem:[%s2 + $0xd0] sm:$0xff]
    %v1425 = vld [vmem:[%s2 + $0xd8] sm:$0xff]
    %v1426 = vld [vmem:[%s2 + $0xe0] sm:$0xff]
    %v1427 = vld [vmem:[%s2 + $0xe8] sm:$0xff]
    %v1428 = vld [vmem:[%s2 + $0xf0] sm:$0xff]
    %v1429 = vld [vmem:[%s2 + $0xf8] sm:$0xff]
    %v1430 = vld [vmem:[%s2 + $0x100] sm:$0xff]
    %v1431 = vld [vmem:[%s2 + $0x108] sm:$0xff]
    %v1432 = vld [vmem:[%s2 + $0x110] sm:$0xff]
    %v1433 = vld [vmem:[%s2 + $0x118] sm:$0xff]
    %v1434 = vld [vmem:[%s2 + $0x120] sm:$0xff]
    %v1435 = vld [vmem:[%s2 + $0x128] sm:$0xff]
    %v1436 = vld [vmem:[%s2 + $0x130] sm:$0xff]
    %v1437 = vld [vmem:[%s2 + $0x138] sm:$0xff]
    %v1438 = vld [vmem:[%s2 + $0x140] sm:$0xff]
    %v1439 = vld [vmem:[%s2 + $0x148] sm:$0xff]
    %v1440 = vld [vmem:[%s2 + $0x150] sm:$0xff]
    %v1441 = vld [vmem:[%s2 + $0x158] sm:$0xff]
    %v1442 = vld [vmem:[%s2 + $0x160] sm:$0xff]
    %v1443 = vld [vmem:[%s2 + $0x168] sm:$0xff]
    %v1444 = vld [vmem:[%s2 + $0x170] sm:$0xff]
    %v1445 = vld [vmem:[%s2 + $0x178] sm:$0xff]
    %v1446 = vld [vmem:[%s2 + $0x180] sm:$0xff]
    %v1447 = vld [vmem:[%s2 + $0x188] sm:$0xff]
    %v1448 = vld [vmem:[%s2 + $0x190] sm:$0xff]
    %v1449 = vld [vmem:[%s2 + $0x198] sm:$0xff]
    %v1450 = vld [vmem:[%s2 + $0x1a0] sm:$0xff]
    %v1451 = vld [vmem:[%s2 + $0x1a8] sm:$0xff]
    %v1452 = vld [vmem:[%s2 + $0x1b0] sm:$0xff]
    %v1453 = vld [vmem:[%s2 + $0x1b8] sm:$0xff]
    %v1454 = vld [vmem:[%s2 + $0x1c0] sm:$0xff]
    %v1455 = vld [vmem:[%s2 + $0x1c8] sm:$0xff]
    %v1456 = vld [vmem:[%s2 + $0x1d0] sm:$0xff]
    %v1457 = vld [vmem:[%s2 + $0x1d8] sm:$0xff]
    %v1458 = vld [vmem:[%s2 + $0x1e0] sm:$0xff]
    %v1459 = vld [vmem:[%s2 + $0x1e8] sm:$0xff]
    %v1460 = vld [vmem:[%s2 + $0x1f0] sm:$0xff]
    %v1461 = vld [vmem:[%s2 + $0x1f8] sm:$0xff]
    %v1462 = vld [vmem:[%s1] sm:$0xff]
    %v1463 = vld [vmem:[%s1 + $0x8] sm:$0xff]
    %v1464 = vld [vmem:[%s1 + $0x10] sm:$0xff]
    %v1465 = vld [vmem:[%s1 + $0x18] sm:$0xff]
    %v1466 = vld [vmem:[%s1 + $0x20] sm:$0xff]
    %v1467 = vld [vmem:[%s1 + $0x28] sm:$0xff]
    %v1468 = vld [vmem:[%s1 + $0x30] sm:$0xff]
    %v1469 = vld [vmem:[%s1 + $0x38] sm:$0xff]
    %v1470 = vld [vmem:[%s1 + $0x40] sm:$0xff]
    %v1471 = vld [vmem:[%s1 + $0x48] sm:$0xff]
    %v1472 = vld [vmem:[%s1 + $0x50] sm:$0xff]
    %v1473 = vld [vmem:[%s1 + $0x58] sm:$0xff]
    %v1474 = vld [vmem:[%s1 + $0x60] sm:$0xff]
    %v1475 = vld [vmem:[%s1 + $0x68] sm:$0xff]
    %v1476 = vld [vmem:[%s1 + $0x70] sm:$0xff]
    %v1477 = vld [vmem:[%s1 + $0x78] sm:$0xff]
    %v1478 = vld [vmem:[%s1 + $0x80] sm:$0xff]
    %v1479 = vld [vmem:[%s1 + $0x88] sm:$0xff]
    %v1480 = vld [vmem:[%s1 + $0x90] sm:$0xff]
    %v1481 = vld [vmem:[%s1 + $0x98] sm:$0xff]
    %v1482 = vld [vmem:[%s1 + $0xa0] sm:$0xff]
    %v1483 = vld [vmem:[%s1 + $0xa8] sm:$0xff]
    %v1484 = vld [vmem:[%s1 + $0xb0] sm:$0xff]
    %v1485 = vld [vmem:[%s1 + $0xb8] sm:$0xff]
    %v1486 = vld [vmem:[%s1 + $0xc0] sm:$0xff]
    %v1487 = vld [vmem:[%s1 + $0xc8] sm:$0xff]
    %v1488 = vld [vmem:[%s1 + $0xd0] sm:$0xff]
    %v1489 = vld [vmem:[%s1 + $0xd8] sm:$0xff]
    %v1490 = vld [vmem:[%s1 + $0xe0] sm:$0xff]
    %v1491 = vld [vmem:[%s1 + $0xe8] sm:$0xff]
    %v1492 = vld [vmem:[%s1 + $0xf0] sm:$0xff]
    %v1493 = vld [vmem:[%s1 + $0xf8] sm:$0xff]
    %v1494 = vld [vmem:[%s1 + $0x100] sm:$0xff]
    %v1495 = vld [vmem:[%s1 + $0x108] sm:$0xff]
    %v1496 = vld [vmem:[%s1 + $0x110] sm:$0xff]
    %v1497 = vld [vmem:[%s1 + $0x118] sm:$0xff]
    %v1498 = vld [vmem:[%s1 + $0x120] sm:$0xff]
    %v1499 = vld [vmem:[%s1 + $0x128] sm:$0xff]
    %v1500 = vld [vmem:[%s1 + $0x130] sm:$0xff]
    %v1501 = vld [vmem:[%s1 + $0x138] sm:$0xff]
    %v1502 = vld [vmem:[%s1 + $0x140] sm:$0xff]
    %v1503 = vld [vmem:[%s1 + $0x148] sm:$0xff]
    %v1504 = vld [vmem:[%s1 + $0x150] sm:$0xff]
    %v1505 = vld [vmem:[%s1 + $0x158] sm:$0xff]
    %v1506 = vld [vmem:[%s1 + $0x160] sm:$0xff]
    %v1507 = vld [vmem:[%s1 + $0x168] sm:$0xff]
    %v1508 = vld [vmem:[%s1 + $0x170] sm:$0xff]
    %v1509 = vld [vmem:[%s1 + $0x178] sm:$0xff]
    %v1510 = vld [vmem:[%s1 + $0x180] sm:$0xff]
    %v1511 = vld [vmem:[%s1 + $0x188] sm:$0xff]
    %v1512 = vld [vmem:[%s1 + $0x190] sm:$0xff]
    %v1513 = vld [vmem:[%s1 + $0x198] sm:$0xff]
    %v1514 = vld [vmem:[%s1 + $0x1a0] sm:$0xff]
    %v1515 = vld [vmem:[%s1 + $0x1a8] sm:$0xff]
    %v1516 = vld [vmem:[%s1 + $0x1b0] sm:$0xff]
    %v1517 = vld [vmem:[%s1 + $0x1b8] sm:$0xff]
    %v1518 = vld [vmem:[%s1 + $0x1c0] sm:$0xff]
    %v1519 = vld [vmem:[%s1 + $0x1c8] sm:$0xff]
    %v1520 = vld [vmem:[%s1 + $0x1d0] sm:$0xff]
    %v1521 = vld [vmem:[%s1 + $0x1d8] sm:$0xff]
    %v1522 = vld [vmem:[%s1 + $0x1e0] sm:$0xff]
    %v1523 = vld [vmem:[%s1 + $0x1e8] sm:$0xff]
    %v1524 = vld [vmem:[%s1 + $0x1f0] sm:$0xff]
    %v1525 = vld [vmem:[%s1 + $0x1f8] sm:$0xff]
    %1526 = vmatprep.subr.mxu0 %v1463
    %1527 = vmatpush1.msra.mxu0 %v1462
    %1528 = vmatprep.subr.mxu0 %v1467
    %1529 = vmatpush1.msra.mxu0 %v1466
    %1530 = vmatprep.subr.mxu0 %v1471
    %1531 = vmatpush1.msra.mxu0 %v1470
    %1532 = vmatprep.subr.mxu0 %v1475
    %1533 = vmatpush1.msra.mxu0 %v1474
    %1534 = vmatprep.subr.mxu0 %v1479
    %1535 = vmatpush1.msra.mxu0 %v1478
    %1536 = vmatprep.subr.mxu0 %v1483
    %1537 = vmatpush1.msra.mxu0 %v1482
    %1538 = vmatprep.subr.mxu0 %v1487
    %1539 = vmatpush1.msra.mxu0 %v1486
    %1540 = vmatprep.subr.mxu0 %v1491
    %1541 = vmatpush1.msra.mxu0 %v1490
    %1542 = vmatprep.subr.mxu0 %v1495
    %1543 = vmatpush1.msra.mxu0 %v1494
    %1544 = vmatprep.subr.mxu0 %v1499
    %1545 = vmatpush1.msra.mxu0 %v1498
    %1546 = vmatprep.subr.mxu0 %v1503
    %1547 = vmatpush1.msra.mxu0 %v1502
    %1548 = vmatprep.subr.mxu0 %v1507
    %1549 = vmatpush1.msra.mxu0 %v1506
    %1550 = vmatprep.subr.mxu0 %v1511
    %1551 = vmatpush1.msra.mxu0 %v1510
    %1552 = vmatprep.subr.mxu0 %v1515
    %1553 = vmatpush1.msra.mxu0 %v1514
    %1554 = vmatprep.subr.mxu0 %v1519
    %1555 = vmatpush1.msra.mxu0 %v1518
    %1556 = vmatprep.subr.mxu0 %v1523
    %1557 = vmatpush1.msra.mxu0 %v1522
    %1558 = vmatprep.subr.mxu0 0.0
    %1559 = vmatpush1.msra.mxu0 0.0
    %1560 = vmatprep.subr.mxu0 0.0
    %1561 = vmatpush1.msra.mxu0 0.0
    %1562 = vmatprep.subr.mxu0 0.0
    %1563 = vmatpush1.msra.mxu0 0.0
    %1564 = vmatprep.subr.mxu0 0.0
    %1565 = vmatpush1.msra.mxu0 0.0
    %1566 = vmatprep.subr.mxu0 0.0
    %1567 = vmatpush1.msra.mxu0 0.0
    %1568 = vmatprep.subr.mxu0 0.0
    %1569 = vmatpush1.msra.mxu0 0.0
    %1570 = vmatprep.subr.mxu0 0.0
    %1571 = vmatpush1.msra.mxu0 0.0
    %1572 = vmatprep.subr.mxu0 0.0
    %1573 = vmatpush1.msra.mxu0 0.0
    %1574 = vmatprep.subr.mxu0 0.0
    %1575 = vmatpush1.msra.mxu0 0.0
    %1576 = vmatprep.subr.mxu0 0.0
    %1577 = vmatpush1.msra.mxu0 0.0
    %1578 = vmatprep.subr.mxu0 0.0
    %1579 = vmatpush1.msra.mxu0 0.0
    %1580 = vmatprep.subr.mxu0 0.0
    %1581 = vmatpush1.msra.mxu0 0.0
    %1582 = vmatprep.subr.mxu0 0.0
    %1583 = vmatpush1.msra.mxu0 0.0
    %1584 = vmatprep.subr.mxu0 0.0
    %1585 = vmatpush1.msra.mxu0 0.0
    %1586 = vmatprep.subr.mxu0 0.0
    %1587 = vmatpush1.msra.mxu0 0.0
    %1588 = vmatprep.subr.mxu0 0.0
    %1589 = vmatpush1.msra.mxu0 0.0
    %1590 = vmatprep.mubr.f32.mxu0 0.0
    %1591 = vmatmul.mubr.f32.gmra.mrb[0].mxu0 %v1397
    %v1592 = vpop.f32.mrb[0].mxu0
    %v1593 = vadd.f32 0.0, %v1592
    %v1594 = vpop.f32.mrb[0].mxu0
    %v1595 = vadd.f32 0.0, %v1594
    %1596 = vdwg.mxu0
    %1597 = vmatprep.subr.mxu0 %v1465
    %1598 = vmatpush1.msra.mxu0 %v1464
    %1599 = vmatprep.subr.mxu0 %v1469
    %1600 = vmatpush1.msra.mxu0 %v1468
    %1601 = vmatprep.subr.mxu0 %v1473
    %1602 = vmatpush1.msra.mxu0 %v1472
    %1603 = vmatprep.subr.mxu0 %v1477
    %1604 = vmatpush1.msra.mxu0 %v1476
    %1605 = vmatprep.subr.mxu0 %v1481
    %1606 = vmatpush1.msra.mxu0 %v1480
    %1607 = vmatprep.subr.mxu0 %v1485
    %1608 = vmatpush1.msra.mxu0 %v1484
    %1609 = vmatprep.subr.mxu0 %v1489
    %1610 = vmatpush1.msra.mxu0 %v1488
    %1611 = vmatprep.subr.mxu0 %v1493
    %1612 = vmatpush1.msra.mxu0 %v1492
    %1613 = vmatprep.subr.mxu0 %v1497
    %1614 = vmatpush1.msra.mxu0 %v1496
    %1615 = vmatprep.subr.mxu0 %v1501
    %1616 = vmatpush1.msra.mxu0 %v1500
    %1617 = vmatprep.subr.mxu0 %v1505
    %1618 = vmatpush1.msra.mxu0 %v1504
    %1619 = vmatprep.subr.mxu0 %v1509
    %1620 = vmatpush1.msra.mxu0 %v1508
    %1621 = vmatprep.subr.mxu0 %v1513
    %1622 = vmatpush1.msra.mxu0 %v1512
    %1623 = vmatprep.subr.mxu0 %v1517
    %1624 = vmatpush1.msra.mxu0 %v1516
    %1625 = vmatprep.subr.mxu0 %v1521
    %1626 = vmatpush1.msra.mxu0 %v1520
    %1627 = vmatprep.subr.mxu0 %v1525
    %1628 = vmatpush1.msra.mxu0 %v1524
    %1629 = vmatprep.subr.mxu0 0.0
    %1630 = vmatpush1.msra.mxu0 0.0
    %1631 = vmatprep.subr.mxu0 0.0
    %1632 = vmatpush1.msra.mxu0 0.0
    %1633 = vmatprep.subr.mxu0 0.0
    %1634 = vmatpush1.msra.mxu0 0.0
    %1635 = vmatprep.subr.mxu0 0.0
    %1636 = vmatpush1.msra.mxu0 0.0
    %1637 = vmatprep.subr.mxu0 0.0
    %1638 = vmatpush1.msra.mxu0 0.0
    %1639 = vmatprep.subr.mxu0 0.0
    %1640 = vmatpush1.msra.mxu0 0.0
    %1641 = vmatprep.subr.mxu0 0.0
    %1642 = vmatpush1.msra.mxu0 0.0
    %1643 = vmatprep.subr.mxu0 0.0
    %1644 = vmatpush1.msra.mxu0 0.0
    %1645 = vmatprep.subr.mxu0 0.0
    %1646 = vmatpush1.msra.mxu0 0.0
    %1647 = vmatprep.subr.mxu0 0.0
    %1648 = vmatpush1.msra.mxu0 0.0
    %1649 = vmatprep.subr.mxu0 0.0
    %1650 = vmatpush1.msra.mxu0 0.0
    %1651 = vmatprep.subr.mxu0 0.0
    %1652 = vmatpush1.msra.mxu0 0.0
    %1653 = vmatprep.subr.mxu0 0.0
    %1654 = vmatpush1.msra.mxu0 0.0
    %1655 = vmatprep.subr.mxu0 0.0
    %1656 = vmatpush1.msra.mxu0 0.0
    %1657 = vmatprep.subr.mxu0 0.0
    %1658 = vmatpush1.msra.mxu0 0.0
    %1659 = vmatprep.subr.mxu0 0.0
    %1660 = vmatpush1.msra.mxu0 0.0
    %1661 = vmatprep.mubr.f32.mxu0 0.0
    %1662 = vmatmul.mubr.f32.gmra.mrb[0].mxu0 %v1397
    %v1663 = vpop.f32.mrb[0].mxu0
    %v1664 = vadd.f32 0.0, %v1663
    %v1665 = vpop.f32.mrb[0].mxu0
    %v1666 = vadd.f32 0.0, %v1665
    %1667 = vdwg.mxu0
    %1668 = vmatprep.subr.mxu0 %v1399
    %1669 = vmatpush1.msra.mxu0 %v1398
    %1670 = vmatprep.subr.mxu0 %v1403
    %1671 = vmatpush1.msra.mxu0 %v1402
    %1672 = vmatprep.subr.mxu0 %v1407
    %1673 = vmatpush1.msra.mxu0 %v1406
    %1674 = vmatprep.subr.mxu0 %v1411
    %1675 = vmatpush1.msra.mxu0 %v1410
    %1676 = vmatprep.subr.mxu0 %v1415
    %1677 = vmatpush1.msra.mxu0 %v1414
    %1678 = vmatprep.subr.mxu0 %v1419
    %1679 = vmatpush1.msra.mxu0 %v1418
    %1680 = vmatprep.subr.mxu0 %v1423
    %1681 = vmatpush1.msra.mxu0 %v1422
    %1682 = vmatprep.subr.mxu0 %v1427
    %1683 = vmatpush1.msra.mxu0 %v1426
    %1684 = vmatprep.subr.mxu0 %v1431
    %1685 = vmatpush1.msra.mxu0 %v1430
    %1686 = vmatprep.subr.mxu0 %v1435
    %1687 = vmatpush1.msra.mxu0 %v1434
    %1688 = vmatprep.subr.mxu0 %v1439
    %1689 = vmatpush1.msra.mxu0 %v1438
    %1690 = vmatprep.subr.mxu0 %v1443
    %1691 = vmatpush1.msra.mxu0 %v1442
    %1692 = vmatprep.subr.mxu0 %v1447
    %1693 = vmatpush1.msra.mxu0 %v1446
    %1694 = vmatprep.subr.mxu0 %v1451
    %1695 = vmatpush1.msra.mxu0 %v1450
    %1696 = vmatprep.subr.mxu0 %v1455
    %1697 = vmatpush1.msra.mxu0 %v1454
    %1698 = vmatprep.subr.mxu0 %v1459
    %1699 = vmatpush1.msra.mxu0 %v1458
    %1700 = vmatprep.subr.mxu0 0.0
    %1701 = vmatpush1.msra.mxu0 0.0
    %1702 = vmatprep.subr.mxu0 0.0
    %1703 = vmatpush1.msra.mxu0 0.0
    %1704 = vmatprep.subr.mxu0 0.0
    %1705 = vmatpush1.msra.mxu0 0.0
    %1706 = vmatprep.subr.mxu0 0.0
    %1707 = vmatpush1.msra.mxu0 0.0
    %1708 = vmatprep.subr.mxu0 0.0
    %1709 = vmatpush1.msra.mxu0 0.0
    %1710 = vmatprep.subr.mxu0 0.0
    %1711 = vmatpush1.msra.mxu0 0.0
    %1712 = vmatprep.subr.mxu0 0.0
    %1713 = vmatpush1.msra.mxu0 0.0
    %1714 = vmatprep.subr.mxu0 0.0
    %1715 = vmatpush1.msra.mxu0 0.0
    %1716 = vmatprep.subr.mxu0 0.0
    %1717 = vmatpush1.msra.mxu0 0.0
    %1718 = vmatprep.subr.mxu0 0.0
    %1719 = vmatpush1.msra.mxu0 0.0
    %1720 = vmatprep.subr.mxu0 0.0
    %1721 = vmatpush1.msra.mxu0 0.0
    %1722 = vmatprep.subr.mxu0 0.0
    %1723 = vmatpush1.msra.mxu0 0.0
    %1724 = vmatprep.subr.mxu0 0.0
    %1725 = vmatpush1.msra.mxu0 0.0
    %1726 = vmatprep.subr.mxu0 0.0
    %1727 = vmatpush1.msra.mxu0 0.0
    %1728 = vmatprep.subr.mxu0 0.0
    %1729 = vmatpush1.msra.mxu0 0.0
    %1730 = vmatprep.subr.mxu0 0.0
    %1731 = vmatpush1.msra.mxu0 0.0
    %1732 = vmatprep.mubr.f32.mxu0 0.0
    %1733 = vmatmul.mubr.f32.gmra.mrb[0].mxu0 %v1391
    %v1734 = vpop.f32.mrb[0].mxu0
    %v1735 = vadd.f32 %v1593, %v1734
    %v1736 = vpop.f32.mrb[0].mxu0
    %v1737 = vadd.f32 %v1595, %v1736
    %1738 = vdwg.mxu0
    %1739 = vmatprep.subr.mxu0 %v1401
    %1740 = vmatpush1.msra.mxu0 %v1400
    %1741 = vmatprep.subr.mxu0 %v1405
    %1742 = vmatpush1.msra.mxu0 %v1404
    %1743 = vmatprep.subr.mxu0 %v1409
    %1744 = vmatpush1.msra.mxu0 %v1408
    %1745 = vmatprep.subr.mxu0 %v1413
    %1746 = vmatpush1.msra.mxu0 %v1412
    %1747 = vmatprep.subr.mxu0 %v1417
    %1748 = vmatpush1.msra.mxu0 %v1416
    %1749 = vmatprep.subr.mxu0 %v1421
    %1750 = vmatpush1.msra.mxu0 %v1420
    %1751 = vmatprep.subr.mxu0 %v1425
    %1752 = vmatpush1.msra.mxu0 %v1424
    %1753 = vmatprep.subr.mxu0 %v1429
    %1754 = vmatpush1.msra.mxu0 %v1428
    %1755 = vmatprep.subr.mxu0 %v1433
    %1756 = vmatpush1.msra.mxu0 %v1432
    %1757 = vmatprep.subr.mxu0 %v1437
    %1758 = vmatpush1.msra.mxu0 %v1436
    %1759 = vmatprep.subr.mxu0 %v1441
    %1760 = vmatpush1.msra.mxu0 %v1440
    %1761 = vmatprep.subr.mxu0 %v1445
    %1762 = vmatpush1.msra.mxu0 %v1444
    %1763 = vmatprep.subr.mxu0 %v1449
    %1764 = vmatpush1.msra.mxu0 %v1448
    %1765 = vmatprep.subr.mxu0 %v1453
    %1766 = vmatpush1.msra.mxu0 %v1452
    %1767 = vmatprep.subr.mxu0 %v1457
    %1768 = vmatpush1.msra.mxu0 %v1456
    %1769 = vmatprep.subr.mxu0 %v1461
    %1770 = vmatpush1.msra.mxu0 %v1460
    %1771 = vmatprep.subr.mxu0 0.0
    %1772 = vmatpush1.msra.mxu0 0.0
    %1773 = vmatprep.subr.mxu0 0.0
    %1774 = vmatpush1.msra.mxu0 0.0
    %1775 = vmatprep.subr.mxu0 0.0
    %1776 = vmatpush1.msra.mxu0 0.0
    %1777 = vmatprep.subr.mxu0 0.0
    %1778 = vmatpush1.msra.mxu0 0.0
    %1779 = vmatprep.subr.mxu0 0.0
    %1780 = vmatpush1.msra.mxu0 0.0
    %1781 = vmatprep.subr.mxu0 0.0
    %1782 = vmatpush1.msra.mxu0 0.0
    %1783 = vmatprep.subr.mxu0 0.0
    %1784 = vmatpush1.msra.mxu0 0.0
    %1785 = vmatprep.subr.mxu0 0.0
    %1786 = vmatpush1.msra.mxu0 0.0
    %1787 = vmatprep.subr.mxu0 0.0
    %1788 = vmatpush1.msra.mxu0 0.0
    %1789 = vmatprep.subr.mxu0 0.0
    %1790 = vmatpush1.msra.mxu0 0.0
    %1791 = vmatprep.subr.mxu0 0.0
    %1792 = vmatpush1.msra.mxu0 0.0
    %1793 = vmatprep.subr.mxu0 0.0
    %1794 = vmatpush1.msra.mxu0 0.0
    %1795 = vmatprep.subr.mxu0 0.0
    %1796 = vmatpush1.msra.mxu0 0.0
    %1797 = vmatprep.subr.mxu0 0.0
    %1798 = vmatpush1.msra.mxu0 0.0
    %1799 = vmatprep.subr.mxu0 0.0
    %1800 = vmatpush1.msra.mxu0 0.0
    %1801 = vmatprep.subr.mxu0 0.0
    %1802 = vmatpush1.msra.mxu0 0.0
    %1803 = vmatprep.mubr.f32.mxu0 0.0
    %1804 = vmatmul.mubr.f32.gmra.mrb[0].mxu0 %v1391
    %v1805 = vpop.f32.mrb[0].mxu0
    %v1806 = vadd.f32 %v1664, %v1805
    %v1807 = vpop.f32.mrb[0].mxu0
    %v1808 = vadd.f32 %v1666, %v1807
    %1809 = vdwg.mxu0
    %v1810 = vadd.f32 %v1735, %v31
    %v1811 = vadd.f32 %v1737, %v35
    %v1812 = vadd.f32 %v1806, %v39
    %v1813 = vadd.f32 %v1808, %v43
    %v1814 = vxor.u32 %v1810, 2147483648
    %v1815 = vmul.f32 %v1814, 1.442695
    %v1816 = vpow.pop %v1815
    %v1817 = vadd.f32 %v1816, 1.0
    %v1818 = vrcp.pop %v1817
    %v1819 = vmul.f32 1.0, %v1818
    %v1820 = vxor.u32 %v1811, 2147483648
    %v1821 = vmul.f32 %v1820, 1.442695
    %v1822 = vpow.pop %v1821
    %v1823 = vadd.f32 %v1822, 1.0
    %v1824 = vrcp.pop %v1823
    %v1825 = vmul.f32 1.0, %v1824
    %v1826 = vtanh.pop %v1812
    %v1827 = vxor.u32 %v1813, 2147483648
    %v1828 = vmul.f32 %v1827, 1.442695
    %v1829 = vpow.pop %v1828
    %v1830 = vadd.f32 %v1829, 1.0
    %v1831 = vrcp.pop %v1830
    %v1832 = vmul.f32 1.0, %v1831
    %v1833 = vmul.f32 %v1825, %v1389
    %v1834 = vmul.f32 %v1819, %v1826
    %v1835 = vadd.f32 %v1833, %v1834
    %v1836 = vtanh.pop %v1835
    %v1837 = vmul.f32 %v1832, %v1836
    %s1838 = scalar_lea.vmem [#allocation2], %s1395
    %1839 = vst [vmem:[%s1838] sm:$0xff] %v1837
  $region34: #{bilstm_forward.1} parent=0 // loop_footer
    %s53 = sadd.s32 1, %s49
  $region35: #{bilstm_forward.1} parent=0 // loop_footer_branch
    %48 = sbr.rel target = $region31
  $region36: #{bilstm_forward.1} parent=0 // loop_exit
    _
  %v1840 = vld [vmem:[%s6] sm:$0x1]
  %v1842 = vlaneseq
  %v1843 = vshrl.u32 %v1842, 7
  %v1844 = vsub.s32 0, %v1843
  %v1845 = vrot.slane %v1840, %v1844
  loop: start=0, step=1, limit=8
  $region37: #{bilstm_forward.1} parent=0 // loop_pre_header
    _
  $region38: #{bilstm_forward.1} parent=0 // loop_header
    %s1848 = sphi 0, %s1852
    %p1849 = scmp.ge.s32.totalorder %s1848, 8
  $region39: #{bilstm_forward.1} parent=0 // loop_header_branch
    %1851 = sbr.rel (%p1849) target = $region43
  $region40: #{bilstm_forward.1} parent=0 // loop_body
    %s1853 = smul.u32 %s1848, 2
    %s1854 = smul.u32 %s1848, 16
    %s1855 = ssub.s32 15, %s1853
    %s1856 = smul.u32 %s1855, 8
    %s1857 = scalar_lea.vmem [#allocation2], %s1854
    %v1858 = vld [vmem:[%s1857] sm:$0xff]
    %s1859 = scalar_lea.vmem [#allocation2], %s1856
    %v1860 = vld [vmem:[%s1859] sm:$0xff]
    %v1861 = vld [vmem:[%s4] sm:$0xff]
    %v1862 = vld [vmem:[%s4 + $0x8] sm:$0xff]
    %v1863 = vld [vmem:[%s4 + $0x10] sm:$0xff]
    %v1864 = vld [vmem:[%s4 + $0x18] sm:$0xff]
    %v1865 = vld [vmem:[%s4 + $0x20] sm:$0xff]
    %v1866 = vld [vmem:[%s4 + $0x28] sm:$0xff]
    %v1867 = vld [vmem:[%s4 + $0x30] sm:$0xff]
    %v1868 = vld [vmem:[%s4 + $0x38] sm:$0xff]
    %v1869 = vld [vmem:[%s5] sm:$0xff]
    %v1870 = vld [vmem:[%s5 + $0x8] sm:$0xff]
    %v1871 = vld [vmem:[%s5 + $0x10] sm:$0xff]
    %v1872 = vld [vmem:[%s5 + $0x18] sm:$0xff]
    %v1873 = vld [vmem:[%s5 + $0x20] sm:$0xff]
    %v1874 = vld [vmem:[%s5 + $0x28] sm:$0xff]
    %v1875 = vld [vmem:[%s5 + $0x30] sm:$0xff]
    %v1876 = vld [vmem:[%s5 + $0x38] sm:$0xff]
    %1878 = vrot.lane.b32.xlu0 %v1860, 64
    %v1879 = vpop.permute.xlu0 %1878
    %vm1880 = vcmask 523264
    %v1881 = vsel %vm1880, %v1879, 0
    %1883 = vmatprep.subr.mxu0 0.0
    %1884 = vmatpush1.msra.mxu0 %v1869
    %1885 = vmatprep.subr.mxu0 0.0
    %1886 = vmatpush1.msra.mxu0 %v1870
    %1887 = vmatprep.subr.mxu0 0.0
    %1888 = vmatpush1.msra.mxu0 %v1871
    %1889 = vmatprep.subr.mxu0 0.0
    %1890 = vmatpush1.msra.mxu0 %v1872
    %1891 = vmatprep.subr.mxu0 0.0
    %1892 = vmatpush1.msra.mxu0 %v1873
    %1893 = vmatprep.subr.mxu0 0.0
    %1894 = vmatpush1.msra.mxu0 %v1874
    %1895 = vmatprep.subr.mxu0 0.0
    %1896 = vmatpush1.msra.mxu0 %v1875
    %1897 = vmatprep.subr.mxu0 0.0
    %1898 = vmatpush1.msra.mxu0 %v1876
    %1899 = vmatprep.subr.mxu0 0.0
    %1900 = vmatpush1.msra.mxu0 0.0
    %1901 = vmatprep.subr.mxu0 0.0
    %1902 = vmatpush1.msra.mxu0 0.0
    %1903 = vmatprep.subr.mxu0 0.0
    %1904 = vmatpush1.msra.mxu0 0.0
    %1905 = vmatprep.subr.mxu0 0.0
    %1906 = vmatpush1.msra.mxu0 0.0
    %1907 = vmatprep.subr.mxu0 0.0
    %1908 = vmatpush1.msra.mxu0 0.0
    %1909 = vmatprep.subr.mxu0 0.0
    %1910 = vmatpush1.msra.mxu0 0.0
    %1911 = vmatprep.subr.mxu0 0.0
    %1912 = vmatpush1.msra.mxu0 0.0
    %1913 = vmatprep.subr.mxu0 0.0
    %1914 = vmatpush1.msra.mxu0 0.0
    %1915 = vmatprep.subr.mxu0 0.0
    %1916 = vmatpush1.msra.mxu0 0.0
    %1917 = vmatprep.subr.mxu0 0.0
    %1918 = vmatpush1.msra.mxu0 0.0
    %1919 = vmatprep.subr.mxu0 0.0
    %1920 = vmatpush1.msra.mxu0 0.0
    %1921 = vmatprep.subr.mxu0 0.0
    %1922 = vmatpush1.msra.mxu0 0.0
    %1923 = vmatprep.subr.mxu0 0.0
    %1924 = vmatpush1.msra.mxu0 0.0
    %1925 = vmatprep.subr.mxu0 0.0
    %1926 = vmatpush1.msra.mxu0 0.0
    %1927 = vmatprep.subr.mxu0 0.0
    %1928 = vmatpush1.msra.mxu0 0.0
    %1929 = vmatprep.subr.mxu0 0.0
    %1930 = vmatpush1.msra.mxu0 0.0
    %1931 = vmatprep.subr.mxu0 0.0
    %1932 = vmatpush1.msra.mxu0 0.0
    %1933 = vmatprep.subr.mxu0 0.0
    %1934 = vmatpush1.msra.mxu0 0.0
    %1935 = vmatprep.subr.mxu0 0.0
    %1936 = vmatpush1.msra.mxu0 0.0
    %1937 = vmatprep.subr.mxu0 0.0
    %1938 = vmatpush1.msra.mxu0 0.0
    %1939 = vmatprep.subr.mxu0 0.0
    %1940 = vmatpush1.msra.mxu0 0.0
    %1941 = vmatprep.subr.mxu0 0.0
    %1942 = vmatpush1.msra.mxu0 0.0
    %1943 = vmatprep.subr.mxu0 0.0
    %1944 = vmatpush1.msra.mxu0 0.0
    %1945 = vmatprep.subr.mxu0 0.0
    %1946 = vmatpush1.msra.mxu0 0.0
    %1947 = vmatprep.mubr.f32.mxu0 0.0
    %1948 = vmatmul.mubr.f32.gmra.mrb[0].mxu0 %v1881
    %v1949 = vpop.f32.mrb[0].mxu0
    %v1950 = vadd.f32 0.0, %v1949
    %v1951 = vpop.f32.mrb[0].mxu0
    %1952 = vdwg.mxu0
    %v1954 = vsel %vm1880, %v1858, 0
    %1956 = vmatprep.subr.mxu0 0.0
    %1957 = vmatpush1.msra.mxu0 %v1861
    %1958 = vmatprep.subr.mxu0 0.0
    %1959 = vmatpush1.msra.mxu0 %v1862
    %1960 = vmatprep.subr.mxu0 0.0
    %1961 = vmatpush1.msra.mxu0 %v1863
    %1962 = vmatprep.subr.mxu0 0.0
    %1963 = vmatpush1.msra.mxu0 %v1864
    %1964 = vmatprep.subr.mxu0 0.0
    %1965 = vmatpush1.msra.mxu0 %v1865
    %1966 = vmatprep.subr.mxu0 0.0
    %1967 = vmatpush1.msra.mxu0 %v1866
    %1968 = vmatprep.subr.mxu0 0.0
    %1969 = vmatpush1.msra.mxu0 %v1867
    %1970 = vmatprep.subr.mxu0 0.0
    %1971 = vmatpush1.msra.mxu0 %v1868
    %1972 = vmatprep.subr.mxu0 0.0
    %1973 = vmatpush1.msra.mxu0 0.0
    %1974 = vmatprep.subr.mxu0 0.0
    %1975 = vmatpush1.msra.mxu0 0.0
    %1976 = vmatprep.subr.mxu0 0.0
    %1977 = vmatpush1.msra.mxu0 0.0
    %1978 = vmatprep.subr.mxu0 0.0
    %1979 = vmatpush1.msra.mxu0 0.0
    %1980 = vmatprep.subr.mxu0 0.0
    %1981 = vmatpush1.msra.mxu0 0.0
    %1982 = vmatprep.subr.mxu0 0.0
    %1983 = vmatpush1.msra.mxu0 0.0
    %1984 = vmatprep.subr.mxu0 0.0
    %1985 = vmatpush1.msra.mxu0 0.0
    %1986 = vmatprep.subr.mxu0 0.0
    %1987 = vmatpush1.msra.mxu0 0.0
    %1988 = vmatprep.subr.mxu0 0.0
    %1989 = vmatpush1.msra.mxu0 0.0
    %1990 = vmatprep.subr.mxu0 0.0
    %1991 = vmatpush1.msra.mxu0 0.0
    %1992 = vmatprep.subr.mxu0 0.0
    %1993 = vmatpush1.msra.mxu0 0.0
    %1994 = vmatprep.subr.mxu0 0.0
    %1995 = vmatpush1.msra.mxu0 0.0
    %1996 = vmatprep.subr.mxu0 0.0
    %1997 = vmatpush1.msra.mxu0 0.0
    %1998 = vmatprep.subr.mxu0 0.0
    %1999 = vmatpush1.msra.mxu0 0.0
    %2000 = vmatprep.subr.mxu0 0.0
    %2001 = vmatpush1.msra.mxu0 0.0
    %2002 = vmatprep.subr.mxu0 0.0
    %2003 = vmatpush1.msra.mxu0 0.0
    %2004 = vmatprep.subr.mxu0 0.0
    %2005 = vmatpush1.msra.mxu0 0.0
    %2006 = vmatprep.subr.mxu0 0.0
    %2007 = vmatpush1.msra.mxu0 0.0
    %2008 = vmatprep.subr.mxu0 0.0
    %2009 = vmatpush1.msra.mxu0 0.0
    %2010 = vmatprep.subr.mxu0 0.0
    %2011 = vmatpush1.msra.mxu0 0.0
    %2012 = vmatprep.subr.mxu0 0.0
    %2013 = vmatpush1.msra.mxu0 0.0
    %2014 = vmatprep.subr.mxu0 0.0
    %2015 = vmatpush1.msra.mxu0 0.0
    %2016 = vmatprep.subr.mxu0 0.0
    %2017 = vmatpush1.msra.mxu0 0.0
    %2018 = vmatprep.subr.mxu0 0.0
    %2019 = vmatpush1.msra.mxu0 0.0
    %2020 = vmatprep.mubr.f32.mxu0 0.0
    %2021 = vmatmul.mubr.f32.gmra.mrb[0].mxu0 %v1954
    %v2022 = vpop.f32.mrb[0].mxu0
    %v2023 = vadd.f32 %v1950, %v2022
    %v2024 = vpop.f32.mrb[0].mxu0
    %2025 = vdwg.mxu0
    %v2026 = vadd.f32 %v2023, %v1845
    %2027 = vmax.xlane.f32.xlu0 %v2026
    %v2028 = vpop.xlane.xlu0 %2027
    %v2029 = vsub.f32 %v2026, %v2028
    %v2030 = vmul.f32 %v2029, 1.442695
    %v2031 = vpow.pop %v2030
    %2032 = vadd.xlane.f32.xlu0 %v2031
    %v2033 = vpop.xlane.xlu0 %2032
    %v2034 = vlog2.pop %v2033
    %v2035 = vmul.f32 %v2034, 0.6931472
    %v2036 = vsub.f32 %v2029, %v2035
    %s2037 = scalar_lea.vmem %s7, %s1854
    %2038 = vst [vmem:[%s2037] sm:$0xff] %v2036
    %s2039 = sadd.s32 %s1853, 1
    %s2040 = smul.u32 %s2039, 8
    %s2041 = ssub.s32 14, %s1853
    %s2042 = smul.u32 %s2041, 8
    %s2043 = scalar_lea.vmem [#allocation2], %s2040
    %v2044 = vld [vmem:[%s2043] sm:$0xff]
    %s2045 = scalar_lea.vmem [#allocation2], %s2042
    %v2046 = vld [vmem:[%s2045] sm:$0xff]
    %v2047 = vld [vmem:[%s4] sm:$0xff]
    %v2048 = vld [vmem:[%s4 + $0x8] sm:$0xff]
    %v2049 = vld [vmem:[%s4 + $0x10] sm:$0xff]
    %v2050 = vld [vmem:[%s4 + $0x18] sm:$0xff]
    %v2051 = vld [vmem:[%s4 + $0x20] sm:$0xff]
    %v2052 = vld [vmem:[%s4 + $0x28] sm:$0xff]
    %v2053 = vld [vmem:[%s4 + $0x30] sm:$0xff]
    %v2054 = vld [vmem:[%s4 + $0x38] sm:$0xff]
    %v2055 = vld [vmem:[%s5] sm:$0xff]
    %v2056 = vld [vmem:[%s5 + $0x8] sm:$0xff]
    %v2057 = vld [vmem:[%s5 + $0x10] sm:$0xff]
    %v2058 = vld [vmem:[%s5 + $0x18] sm:$0xff]
    %v2059 = vld [vmem:[%s5 + $0x20] sm:$0xff]
    %v2060 = vld [vmem:[%s5 + $0x28] sm:$0xff]
    %v2061 = vld [vmem:[%s5 + $0x30] sm:$0xff]
    %v2062 = vld [vmem:[%s5 + $0x38] sm:$0xff]
    %2064 = vrot.lane.b32.xlu0 %v2046, 64
    %v2065 = vpop.permute.xlu0 %2064
    %v2066 = vsel %vm1880, %v2065, 0
    %2068 = vmatprep.subr.mxu0 0.0
    %2069 = vmatpush1.msra.mxu0 %v2055
    %2070 = vmatprep.subr.mxu0 0.0
    %2071 = vmatpush1.msra.mxu0 %v2056
    %2072 = vmatprep.subr.mxu0 0.0
    %2073 = vmatpush1.msra.mxu0 %v2057
    %2074 = vmatprep.subr.mxu0 0.0
    %2075 = vmatpush1.msra.mxu0 %v2058
    %2076 = vmatprep.subr.mxu0 0.0
    %2077 = vmatpush1.msra.mxu0 %v2059
    %2078 = vmatprep.subr.mxu0 0.0
    %2079 = vmatpush1.msra.mxu0 %v2060
    %2080 = vmatprep.subr.mxu0 0.0
    %2081 = vmatpush1.msra.mxu0 %v2061
    %2082 = vmatprep.subr.mxu0 0.0
    %2083 = vmatpush1.msra.mxu0 %v2062
    %2084 = vmatprep.subr.mxu0 0.0
    %2085 = vmatpush1.msra.mxu0 0.0
    %2086 = vmatprep.subr.mxu0 0.0
    %2087 = vmatpush1.msra.mxu0 0.0
    %2088 = vmatprep.subr.mxu0 0.0
    %2089 = vmatpush1.msra.mxu0 0.0
    %2090 = vmatprep.subr.mxu0 0.0
    %2091 = vmatpush1.msra.mxu0 0.0
    %2092 = vmatprep.subr.mxu0 0.0
    %2093 = vmatpush1.msra.mxu0 0.0
    %2094 = vmatprep.subr.mxu0 0.0
    %2095 = vmatpush1.msra.mxu0 0.0
    %2096 = vmatprep.subr.mxu0 0.0
    %2097 = vmatpush1.msra.mxu0 0.0
    %2098 = vmatprep.subr.mxu0 0.0
    %2099 = vmatpush1.msra.mxu0 0.0
    %2100 = vmatprep.subr.mxu0 0.0
    %2101 = vmatpush1.msra.mxu0 0.0
    %2102 = vmatprep.subr.mxu0 0.0
    %2103 = vmatpush1.msra.mxu0 0.0
    %2104 = vmatprep.subr.mxu0 0.0
    %2105 = vmatpush1.msra.mxu0 0.0
    %2106 = vmatprep.subr.mxu0 0.0
    %2107 = vmatpush1.msra.mxu0 0.0
    %2108 = vmatprep.subr.mxu0 0.0
    %2109 = vmatpush1.msra.mxu0 0.0
    %2110 = vmatprep.subr.mxu0 0.0
    %2111 = vmatpush1.msra.mxu0 0.0
    %2112 = vmatprep.subr.mxu0 0.0
    %2113 = vmatpush1.msra.mxu0 0.0
    %2114 = vmatprep.subr.mxu0 0.0
    %2115 = vmatpush1.msra.mxu0 0.0
    %2116 = vmatprep.subr.mxu0 0.0
    %2117 = vmatpush1.msra.mxu0 0.0
    %2118 = vmatprep.subr.mxu0 0.0
    %2119 = vmatpush1.msra.mxu0 0.0
    %2120 = vmatprep.subr.mxu0 0.0
    %2121 = vmatpush1.msra.mxu0 0.0
    %2122 = vmatprep.subr.mxu0 0.0
    %2123 = vmatpush1.msra.mxu0 0.0
    %2124 = vmatprep.subr.mxu0 0.0
    %2125 = vmatpush1.msra.mxu0 0.0
    %2126 = vmatprep.subr.mxu0 0.0
    %2127 = vmatpush1.msra.mxu0 0.0
    %2128 = vmatprep.subr.mxu0 0.0
    %2129 = vmatpush1.msra.mxu0 0.0
    %2130 = vmatprep.subr.mxu0 0.0
    %2131 = vmatpush1.msra.mxu0 0.0
    %2132 = vmatprep.mubr.f32.mxu0 0.0
    %2133 = vmatmul.mubr.f32.gmra.mrb[0].mxu0 %v2066
    %v2134 = vpop.f32.mrb[0].mxu0
    %v2135 = vadd.f32 0.0, %v2134
    %v2136 = vpop.f32.mrb[0].mxu0
    %2137 = vdwg.mxu0
    %v2139 = vsel %vm1880, %v2044, 0
    %2141 = vmatprep.subr.mxu0 0.0
    %2142 = vmatpush1.msra.mxu0 %v2047
    %2143 = vmatprep.subr.mxu0 0.0
    %2144 = vmatpush1.msra.mxu0 %v2048
    %2145 = vmatprep.subr.mxu0 0.0
    %2146 = vmatpush1.msra.mxu0 %v2049
    %2147 = vmatprep.subr.mxu0 0.0
    %2148 = vmatpush1.msra.mxu0 %v2050
    %2149 = vmatprep.subr.mxu0 0.0
    %2150 = vmatpush1.msra.mxu0 %v2051
    %2151 = vmatprep.subr.mxu0 0.0
    %2152 = vmatpush1.msra.mxu0 %v2052
    %2153 = vmatprep.subr.mxu0 0.0
    %2154 = vmatpush1.msra.mxu0 %v2053
    %2155 = vmatprep.subr.mxu0 0.0
    %2156 = vmatpush1.msra.mxu0 %v2054
    %2157 = vmatprep.subr.mxu0 0.0
    %2158 = vmatpush1.msra.mxu0 0.0
    %2159 = vmatprep.subr.mxu0 0.0
    %2160 = vmatpush1.msra.mxu0 0.0
    %2161 = vmatprep.subr.mxu0 0.0
    %2162 = vmatpush1.msra.mxu0 0.0
    %2163 = vmatprep.subr.mxu0 0.0
    %2164 = vmatpush1.msra.mxu0 0.0
    %2165 = vmatprep.subr.mxu0 0.0
    %2166 = vmatpush1.msra.mxu0 0.0
    %2167 = vmatprep.subr.mxu0 0.0
    %2168 = vmatpush1.msra.mxu0 0.0
    %2169 = vmatprep.subr.mxu0 0.0
    %2170 = vmatpush1.msra.mxu0 0.0
    %2171 = vmatprep.subr.mxu0 0.0
    %2172 = vmatpush1.msra.mxu0 0.0
    %2173 = vmatprep.subr.mxu0 0.0
    %2174 = vmatpush1.msra.mxu0 0.0
    %2175 = vmatprep.subr.mxu0 0.0
    %2176 = vmatpush1.msra.mxu0 0.0
    %2177 = vmatprep.subr.mxu0 0.0
    %2178 = vmatpush1.msra.mxu0 0.0
    %2179 = vmatprep.subr.mxu0 0.0
    %2180 = vmatpush1.msra.mxu0 0.0
    %2181 = vmatprep.subr.mxu0 0.0
    %2182 = vmatpush1.msra.mxu0 0.0
    %2183 = vmatprep.subr.mxu0 0.0
    %2184 = vmatpush1.msra.mxu0 0.0
    %2185 = vmatprep.subr.mxu0 0.0
    %2186 = vmatpush1.msra.mxu0 0.0
    %2187 = vmatprep.subr.mxu0 0.0
    %2188 = vmatpush1.msra.mxu0 0.0
    %2189 = vmatprep.subr.mxu0 0.0
    %2190 = vmatpush1.msra.mxu0 0.0
    %2191 = vmatprep.subr.mxu0 0.0
    %2192 = vmatpush1.msra.mxu0 0.0
    %2193 = vmatprep.subr.mxu0 0.0
    %2194 = vmatpush1.msra.mxu0 0.0
    %2195 = vmatprep.subr.mxu0 0.0
    %2196 = vmatpush1.msra.mxu0 0.0
    %2197 = vmatprep.subr.mxu0 0.0
    %2198 = vmatpush1.msra.mxu0 0.0
    %2199 = vmatprep.subr.mxu0 0.0
    %2200 = vmatpush1.msra.mxu0 0.0
    %2201 = vmatprep.subr.mxu0 0.0
    %2202 = vmatpush1.msra.mxu0 0.0
    %2203 = vmatprep.subr.mxu0 0.0
    %2204 = vmatpush1.msra.mxu0 0.0
    %2205 = vmatprep.mubr.f32.mxu0 0.0
    %2206 = vmatmul.mubr.f32.gmra.mrb[0].mxu0 %v2139
    %v2207 = vpop.f32.mrb[0].mxu0
    %v2208 = vadd.f32 %v2135, %v2207
    %v2209 = vpop.f32.mrb[0].mxu0
    %2210 = vdwg.mxu0
    %v2211 = vadd.f32 %v2208, %v1845
    %2212 = vmax.xlane.f32.xlu0 %v2211
    %v2213 = vpop.xlane.xlu0 %2212
    %v2214 = vsub.f32 %v2211, %v2213
    %v2215 = vmul.f32 %v2214, 1.442695
    %v2216 = vpow.pop %v2215
    %2217 = vadd.xlane.f32.xlu0 %v2216
    %v2218 = vpop.xlane.xlu0 %2217
    %v2219 = vlog2.pop %v2218
    %v2220 = vmul.f32 %v2219, 0.6931472
    %v2221 = vsub.f32 %v2214, %v2220
    %s2222 = scalar_lea.vmem %s7, %s2040
    %2223 = vst [vmem:[%s2222] sm:$0xff] %v2221
  $region41: #{bilstm_forward.1} parent=0 // loop_footer
    %s1852 = sadd.s32 1, %s1848
  $region42: #{bilstm_forward.1} parent=0 // loop_footer_branch
    %1847 = sbr.rel target = $region38
  $region43: #{bilstm_forward.1} parent=0 // loop_exit
    _
  // Predicated region
  $region44: #{bilstm_forward.1} parent=0 // pred_check
    _
  $region45: #{bilstm_forward.1} parent=0 // pred_check_branch
    %2225 = sbr.rel (0) target = $region47
  $region46: #{bilstm_forward.1} parent=0 // pred_region
    _
  $region47: #{bilstm_forward.1} parent=0 // pred_fallthru
    _
  // Predicated region
  $region48: #{bilstm_forward.1} parent=0 // pred_check
    _
  $region49: #{bilstm_forward.1} parent=0 // pred_check_branch
    %2227 = sbr.rel (0) target = $region51
  $region50: #{bilstm_forward.1} parent=0 // pred_region
    _
  $region51: #{bilstm_forward.1} parent=0 // pred_fallthru
    _

</llo_original>
